<compile_context>
chip_gen: v6e
topology: v6e:2x2x1
jax: 0.10.0
libtpu: 0.0.40
codegen_flags: <defaults>
</compile_context>

<pallas_src>
import functools

import jax
import jax.numpy as jnp
from jax.experimental import pallas as pl
from jax.experimental.pallas import tpu as pltpu


def _round_up(x: int, m: int) -> int:
    return ((x + m - 1) // m) * m


# --------------------------------------------------------------------------- kernels
def _edge_kernel(n_pad, n_edges, te,
                 dst_ref, edge_in_ref, e_up_ref,
                 w1e_ref, b1e_ref, w2e_ref, b2e_ref,
                 m_ref, e_new_ref):
    """Per edge-tile: fused s||t edge MLP, edge coupling update, message aggregation.

    Grid axis 0 iterates edge tiles ("arbitrary"); m_ref (same block index every step)
    is a VMEM-resident accumulator holding [m_s || m_t] for all (padded) nodes.
    """
    step = pl.program_id(0)

    @pl.when(step == 0)
    def _init():
        m_ref[...] = jnp.zeros_like(m_ref)

    # fused s||t edge MLP: bf16 operands on the MXU, fp32 accumulation.
    h = jnp.dot(edge_in_ref[...], w1e_ref[...], preferred_element_type=jnp.float32)
    h = jnp.maximum(h + b1e_ref[...], 0.0)                               # [te, Hf]
    e_st = jnp.dot(h.astype(jnp.bfloat16), w2e_ref[...],
                   preferred_element_type=jnp.float32) + b2e_ref[...]    # [te, 2*he]

    he = e_new_ref.shape[-1]
    e_s = e_st[:, :he]
    e_t = e_st[:, he:]

    # affine coupling on the edge half being updated (exp lands on the EUP slot).
    e_new_ref[...] = e_up_ref[...] * jnp.exp(e_s) + e_t

    # message aggregation: per-tile one-hot incidence built in VMEM (never in HBM).
    base = step * te
    row_ids = jax.lax.broadcasted_iota(jnp.int32, (n_pad, te), 0)        # node id per row
    col_ids = jax.lax.broadcasted_iota(jnp.int32, (1, te), 1) + base     # global edge id
    valid = col_ids < n_edges                                            # mask ragged tile
    onehot = jnp.where((row_ids == dst_ref[...]) & valid, 1.0, 0.0)      # [n_pad, te]
    onehot = onehot.astype(jnp.bfloat16)                                 # 0/1 exact in bf16
    m_ref[...] += jnp.dot(onehot, e_st.astype(jnp.bfloat16),
                          preferred_element_type=jnp.float32)


def _node_kernel(x_in_ref, m_ref, x_up_ref,
                 w1vx_ref, w1vm_ref, b1v_ref, w2v_ref, b2v_ref,
                 x_new_ref):
    """Per node-tile: fused s||t node MLP + node coupling update ("parallel" axis)."""
    h = (jnp.dot(x_in_ref[...], w1vx_ref[...], preferred_element_type=jnp.float32)
         + jnp.dot(m_ref[...], w1vm_ref[...], preferred_element_type=jnp.float32)
         + b1v_ref[...])
    h = jnp.maximum(h, 0.0)                                              # [tn, Hf]
    v = jnp.dot(h.astype(jnp.bfloat16), w2v_ref[...],
                preferred_element_type=jnp.float32) + b2v_ref[...]       # [tn, 2*hx]
    hx = x_new_ref.shape[-1]
    v_s = v[:, :hx]
    v_t = v[:, hx:]
    x_new_ref[...] = x_up_ref[...] * jnp.exp(v_s) + v_t


# --------------------------------------------------------------------------- params
def init_relnet(key, d_edge_in, d_edge_out, d_node_in, d_node_out, hidden):
    ks = jax.random.split(key, 6)
    scale = 0.1
    return dict(
        w1e=scale * jax.random.normal(ks[0], (d_edge_in, hidden), jnp.float32),
        b1e=jnp.zeros((1, hidden), jnp.float32),
        w2e=scale * jax.random.normal(ks[1], (hidden, d_edge_out), jnp.float32),
        b2e=jnp.zeros((1, d_edge_out), jnp.float32),
        w1vx=scale * jax.random.normal(ks[2], (d_node_in, hidden), jnp.float32),
        w1vm=scale * jax.random.normal(ks[3], (d_edge_out, hidden), jnp.float32),
        b1v=jnp.zeros((1, hidden), jnp.float32),
        w2v=scale * jax.random.normal(ks[4], (hidden, d_node_out), jnp.float32),
        b2v=jnp.zeros((1, d_node_out), jnp.float32),
    )


def _pack_params(s, t, hidden_pad):
    """Fuse s and t into single wider (block-diagonal) matmuls; weights cast to bf16."""
    bf = jnp.bfloat16

    def pad_cols(w, n):
        return jnp.pad(w, ((0, 0), (0, n - w.shape[1])))

    def pad_rows(w, n):
        return jnp.pad(w, ((0, n - w.shape[0]), (0, 0)))

    def block_diag(a, b):
        z_ab = jnp.zeros((a.shape[0], b.shape[1]), a.dtype)
        z_ba = jnp.zeros((b.shape[0], a.shape[1]), a.dtype)
        return jnp.concatenate(
            [jnp.concatenate([a, z_ab], axis=1),
             jnp.concatenate([z_ba, b], axis=1)], axis=0)

    return dict(
        # edge MLP (shared input -> concat; second layer block-diagonal)
        w1e=pad_cols(jnp.concatenate([s["w1e"], t["w1e"]], axis=1), hidden_pad).astype(bf),
        b1e=pad_cols(jnp.concatenate([s["b1e"], t["b1e"]], axis=1), hidden_pad),
        w2e=pad_rows(block_diag(s["w2e"], t["w2e"]), hidden_pad).astype(bf),
        b2e=jnp.concatenate([s["b2e"], t["b2e"]], axis=1),
        # node MLP
        w1vx=pad_cols(jnp.concatenate([s["w1vx"], t["w1vx"]], axis=1), hidden_pad).astype(bf),
        w1vm=pad_cols(block_diag(s["w1vm"], t["w1vm"]), hidden_pad).astype(bf),
        b1v=pad_cols(jnp.concatenate([s["b1v"], t["b1v"]], axis=1), hidden_pad),
        w2v=pad_rows(block_diag(s["w2v"], t["w2v"]), hidden_pad).astype(bf),
        b2v=jnp.concatenate([s["b2v"], t["b2v"]], axis=1),
    )


# --------------------------------------------------------------------------- wrapper
_VMEM_LIMIT = 48 * 1024 * 1024   # below v7x's 64 MiB physical VMEM, above 32 MiB default


@functools.partial(jax.jit, static_argnames=("mask",))
def grevnet_forward(x, edge_attr, edge_index, params, mask=0):
    """Forward pass of one GRevNet half-layer.

    x          : [N, Fx]  float32 node features
    edge_attr  : [E, Fe]  float32 edge features
    edge_index : [2, E]   int32   (src, dst)
    """
    N, Fx = x.shape
    E, Fe = edge_attr.shape
    hx = -(-Fx // 2)
    he = -(-Fe // 2)

    x0, x1 = x[:, :hx], x[:, hx:]
    e0, e1 = edge_attr[:, :he], edge_attr[:, he:]
    if mask == 0:
        x_in, x_up, e_in, e_up = x1, x0, e1, e0     # update left half using right half
    else:
        x_in, x_up, e_in, e_up = x0, x1, e0, e1     # update right half using left half
    # NOTE: as in the original, mask=1 with odd Fx/Fe needs params sized for that split.

    dxin, dxup = x_in.shape[1], x_up.shape[1]
    deup = e_up.shape[1]

    src = edge_index[0]
    dst = edge_index[1]

    # glue: gather endpoint features (data-dependent indexing stays in XLA).
    # TODO(synk): move this gather in-kernel (pl.Element rows indexed by prefetched src/dst)
    # to avoid the E x (2*dxin) HBM round trip.
    edge_in = jnp.concatenate([x_in[src], x_in[dst], e_in], axis=1)
    d_e_in = edge_in.shape[1]

    H = params["s"]["w1e"].shape[1]
    hidden_pad = _round_up(2 * H, 128)               # fused + lane-aligned hidden dim
    p = _pack_params(params["s"], params["t"], hidden_pad)

    # ---- tile sizes / padding (block last-two-dims rule: mult of (8,128) or full dim) ----
    tn = min(_round_up(N, 8), 512)
    n_pad = _round_up(N, tn)

    e8 = _round_up(E, 8)
    if e8 <= 256:
        te = e8                                      # single full-ish tile (te == e_pad)
    else:
        # keep the in-kernel one-hot [n_pad, te] (bf16) under ~8 MiB; te multiple of 128
        cap = max(128, (((8 << 20) // (2 * n_pad)) // 128) * 128)
        te = min(256, cap)
    e_pad = _round_up(E, te)

    def pad_rows_to(a, n):
        return jnp.pad(a, ((0, n - a.shape[0]), (0, 0)))

    edge_in_p = pad_rows_to(edge_in, e_pad).astype(jnp.bfloat16)
    e_up_p = pad_rows_to(e_up, e_pad)
    dst_p = jnp.pad(dst.astype(jnp.int32), (0, e_pad - E)).reshape(1, e_pad)
    x_in_p = pad_rows_to(x_in, n_pad).astype(jnp.bfloat16)
    x_up_p = pad_rows_to(x_up, n_pad)

    # ---------------- kernel 1: edge MLP + edge coupling + aggregation ----------------
    grid_e = e_pad // te
    edge_flops = (2 * e_pad * d_e_in * hidden_pad
                  + 2 * e_pad * hidden_pad * 2 * deup
                  + 2 * n_pad * e_pad * 2 * deup)
    edge_bytes = int(edge_in_p.size * 2 + e_up_p.size * 4 + dst_p.size * 4
                     + (n_pad * 2 * deup + e_pad * deup) * 4)

    m_agg, e_new = pl.pallas_call(
        functools.partial(_edge_kernel, n_pad, E, te),
        grid=(grid_e,),
        in_specs=[
            pl.BlockSpec((1, te), lambda e: (0, e)),            # dst indices
            pl.BlockSpec((te, d_e_in), lambda e: (e, 0)),       # edge MLP input
            pl.BlockSpec((te, deup), lambda e: (e, 0)),         # edge half being updated
            pl.BlockSpec(p["w1e"].shape, lambda e: (0, 0)),     # weights: resident
            pl.BlockSpec(p["b1e"].shape, lambda e: (0, 0)),
            pl.BlockSpec(p["w2e"].shape, lambda e: (0, 0)),
            pl.BlockSpec(p["b2e"].shape, lambda e: (0, 0)),
        ],
        out_specs=(
            pl.BlockSpec((n_pad, 2 * deup), lambda e: (0, 0)),  # [m_s || m_t] accumulator
            pl.BlockSpec((te, deup), lambda e: (e, 0)),         # updated edge half
        ),
        out_shape=(
            jax.ShapeDtypeStruct((n_pad, 2 * deup), jnp.float32),
            jax.ShapeDtypeStruct((e_pad, deup), jnp.float32),
        ),
        input_output_aliases={2: 1},                            # e_up buffer -> e_new
        compiler_params=pltpu.CompilerParams(
            dimension_semantics=("arbitrary",),                 # reduction over edge tiles
            vmem_limit_bytes=_VMEM_LIMIT),
        cost_estimate=pl.CostEstimate(
            flops=edge_flops, transcendentals=e_pad * deup, bytes_accessed=edge_bytes),
    )(dst_p, edge_in_p, e_up_p, p["w1e"], p["b1e"], p["w2e"], p["b2e"])

    # ---------------- kernel 2: node MLP + node coupling ----------------
    m_bf = m_agg.astype(jnp.bfloat16)
    grid_n = n_pad // tn
    node_flops = 2 * n_pad * (dxin * hidden_pad + 2 * deup * hidden_pad
                              + hidden_pad * 2 * dxup)
    node_bytes = int(x_in_p.size * 2 + m_bf.size * 2 + x_up_p.size * 4 + n_pad * dxup * 4)

    x_new = pl.pallas_call(
        _node_kernel,
        grid=(grid_n,),
        in_specs=[
            pl.BlockSpec((tn, dxin), lambda i: (i, 0)),
            pl.BlockSpec((tn, 2 * deup), lambda i: (i, 0)),
            pl.BlockSpec((tn, dxup), lambda i: (i, 0)),
            pl.BlockSpec(p["w1vx"].shape, lambda i: (0, 0)),
            pl.BlockSpec(p["w1vm"].shape, lambda i: (0, 0)),
            pl.BlockSpec(p["b1v"].shape, lambda i: (0, 0)),
            pl.BlockSpec(p["w2v"].shape, lambda i: (0, 0)),
            pl.BlockSpec(p["b2v"].shape, lambda i: (0, 0)),
        ],
        out_specs=pl.BlockSpec((tn, dxup), lambda i: (i, 0)),
        out_shape=jax.ShapeDtypeStruct((n_pad, dxup), jnp.float32),
        input_output_aliases={2: 0},                            # x_up buffer -> x_new
        compiler_params=pltpu.CompilerParams(
            dimension_semantics=("parallel",),                  # v7x: shard across 2 TCs
            vmem_limit_bytes=_VMEM_LIMIT),
        cost_estimate=pl.CostEstimate(
            flops=node_flops, transcendentals=n_pad * dxup, bytes_accessed=node_bytes),
    )(x_in_p, m_bf, x_up_p, p["w1vx"], p["w1vm"], p["b1v"], p["w2v"], p["b2v"])

    x_new = x_new[:N]
    e_new = e_new[:E]
    # TODO(synk): fully lane-dense output layout would put N/E on the lane axis ([F, N]);
    # kept features-last here to match the module's memory layout.

    if mask == 0:
        x_out = jnp.concatenate([x_new, x_in], axis=1)
        e_out = jnp.concatenate([e_new, e_in], axis=1)
    else:
        x_out = jnp.concatenate([x_in, x_new], axis=1)
        e_out = jnp.concatenate([e_in, e_new], axis=1)
    return x_out, e_out


# --------------------------------------------------------------------------- reference
def reference_forward(x, edge_attr, edge_index, params, mask=0):
    """Pure-JAX fp32 reference with identical semantics (for a loose numerical check)."""
    N, Fx = x.shape
    E, Fe = edge_attr.shape
    hx = -(-Fx // 2)
    he = -(-Fe // 2)
    x0, x1 = x[:, :hx], x[:, hx:]
    e0, e1 = edge_attr[:, :he], edge_attr[:, he:]
    if mask == 0:
        x_in, x_up, e_in, e_up = x1, x0, e1, e0
    else:
        x_in, x_up, e_in, e_up = x0, x1, e0, e1
    src, dst = edge_index[0], edge_index[1]
    edge_in = jnp.concatenate([x_in[src], x_in[dst], e_in], axis=1)

    def relnet(p):
        h_e = jax.nn.relu(edge_in @ p["w1e"] + p["b1e"])
        e_out = h_e @ p["w2e"] + p["b2e"]
        m = jnp.zeros((N, e_out.shape[1]), jnp.float32).at[dst].add(e_out)
        h_v = jax.nn.relu(x_in @ p["w1vx"] + m @ p["w1vm"] + p["b1v"])
        return h_v @ p["w2v"] + p["b2v"], e_out

    v_s, e_s = relnet(params["s"])
    v_t, e_t = relnet(params["t"])
    x_new = x_up * jnp.exp(v_s) + v_t
    e_new = e_up * jnp.exp(e_s) + e_t
    if mask == 0:
        return jnp.concatenate([x_new, x_in], 1), jnp.concatenate([e_new, e_in], 1)
    return jnp.concatenate([x_in, x_new], 1), jnp.concatenate([e_in, e_new], 1)


if __name__ == "__main__":
    key = jax.random.PRNGKey(0)
    # Small graph, but big enough to exercise multiple edge tiles + ragged-tile masking.
    N, E, Fx, Fe, H = 48, 320, 8, 8, 32
    hx, he = Fx // 2 + Fx % 2, Fe // 2 + Fe % 2           # = 4, 4
    d_in_half_x, d_in_half_e = Fx - hx, Fe - he           # input halves for mask=0

    k_x, k_e, k_src, k_dst, k_s, k_t = jax.random.split(key, 6)
    x = jax.random.normal(k_x, (N, Fx), jnp.float32)
    edge_attr = jax.random.normal(k_e, (E, Fe), jnp.float32)
    src = jax.random.randint(k_src, (E,), 0, N, dtype=jnp.int32)
    dst = jax.random.randint(k_dst, (E,), 0, N, dtype=jnp.int32)
    edge_index = jnp.stack([src, dst], axis=0)

    d_edge_in = 2 * d_in_half_x + d_in_half_e             # concat(x_src, x_dst, e_in)
    params = {
        "s": init_relnet(k_s, d_edge_in, he, d_in_half_x, hx, H),
        "t": init_relnet(k_t, d_edge_in, he, d_in_half_x, hx, H),
    }

    x_out, e_out = grevnet_forward(x, edge_attr, edge_index, params, mask=0)
    jax.block_until_ready((x_out, e_out))
    assert x_out.shape == (N, Fx) and e_out.shape == (E, Fe)

    x_ref, e_ref = reference_forward(x, edge_attr, edge_index, params, mask=0)
    assert bool(jnp.allclose(x_out, x_ref, rtol=5e-2, atol=5e-2))
    assert bool(jnp.allclose(e_out, e_ref, rtol=5e-2, atol=5e-2))
    print("KERNEL_OK")
</pallas_src>

<mosaic_0001>
module attributes {stable_mosaic.version = 11 : i64} {
  func.func @_edge_kernel(%arg0: i32, %arg1: memref<1x256xi32, #tpu.memory_space<vmem>>, %arg2: memref<256x12xbf16, #tpu.memory_space<vmem>>, %arg3: memref<256x4xf32, #tpu.memory_space<vmem>>, %arg4: memref<12x128xbf16, #tpu.memory_space<vmem>>, %arg5: memref<1x128xf32, #tpu.memory_space<vmem>>, %arg6: memref<128x8xbf16, #tpu.memory_space<vmem>>, %arg7: memref<1x8xf32, #tpu.memory_space<vmem>>, %arg8: memref<48x8xf32, #tpu.memory_space<vmem>>, %arg9: memref<256x4xf32, #tpu.memory_space<vmem>>) attributes {dimension_semantics = [#tpu.dimension_semantics<arbitrary>], iteration_bounds = array<i64: 2>, scalar_prefetch = 0 : i64, scratch_operands = 0 : i64, tpu.core_type = #tpu.core_type<tc>, window_params = [{transform_indices = @transform_0, window_bounds = array<i64: 1, 256>}, {transform_indices = @transform_1, window_bounds = array<i64: 256, 12>}, {transform_indices = @transform_2, window_bounds = array<i64: 256, 4>}, {pipeline_mode = #tpu.pipeline_mode<synchronous>, transform_indices = @transform_3, window_bounds = array<i64: 12, 128>}, {pipeline_mode = #tpu.pipeline_mode<synchronous>, transform_indices = @transform_4, window_bounds = array<i64: 1, 128>}, {pipeline_mode = #tpu.pipeline_mode<synchronous>, transform_indices = @transform_5, window_bounds = array<i64: 128, 8>}, {pipeline_mode = #tpu.pipeline_mode<synchronous>, transform_indices = @transform_6, window_bounds = array<i64: 1, 8>}, {pipeline_mode = #tpu.pipeline_mode<synchronous>, transform_indices = @transform_7, window_bounds = array<i64: 48, 8>}, {transform_indices = @transform_8, window_bounds = array<i64: 256, 4>}]} {
    %c0_i32 = arith.constant 0 : i32
    %0 = arith.cmpi eq, %arg0, %c0_i32 : i32
    %1 = arith.extui %0 : i1 to i32
    %c0_i32_0 = arith.constant 0 : i32
    %2 = arith.cmpi ne, %1, %c0_i32_0 : i32
    scf.if %2 {
      %cst_25 = arith.constant 0.000000e+00 : f32
      %45 = vector.broadcast %cst_25 : f32 to vector<48x8xf32>
      %c0_26 = arith.constant 0 : index
      %c0_27 = arith.constant 0 : index
      %46 = vector.load %arg8[%c0_26, %c0_27] : memref<48x8xf32, #tpu.memory_space<vmem>>, vector<48x8xf32>
      tpu.vector_store %arg8[%c0_26, %c0_27], %45 {strides = array<i32>} : memref<48x8xf32, #tpu.memory_space<vmem>>, vector<48x8xf32>,
    } else {
    }
    %c0 = arith.constant 0 : index
    %c0_1 = arith.constant 0 : index
    %3 = vector.load %arg2[%c0, %c0_1] : memref<256x12xbf16, #tpu.memory_space<vmem>>, vector<256x12xbf16>
    %c0_2 = arith.constant 0 : index
    %c0_3 = arith.constant 0 : index
    %4 = vector.load %arg4[%c0_2, %c0_3] : memref<12x128xbf16, #tpu.memory_space<vmem>>, vector<12x128xbf16>
    %cst = arith.constant dense<0.000000e+00> : vector<256x128xf32>
    %5 = tpu.matmul %3, %4, %cst {dimension_numbers = #tpu.dot_dimension_numbers<[1], [0], [0], [1], [0, 0, 1, 1], [], []>} : vector<256x12xbf16>, vector<12x128xbf16>, vector<256x128xf32> -> vector<256x128xf32>
    %c0_4 = arith.constant 0 : index
    %c0_5 = arith.constant 0 : index
    %6 = vector.load %arg5[%c0_4, %c0_5] : memref<1x128xf32, #tpu.memory_space<vmem>>, vector<1x128xf32>
    %7 = vector.broadcast %6 : vector<1x128xf32> to vector<256x128xf32>
    %8 = arith.addf %5, %7 : vector<256x128xf32>
    %cst_6 = arith.constant 0.000000e+00 : f32
    %9 = vector.broadcast %cst_6 : f32 to vector<256x128xf32>
    %10 = arith.maximumf %8, %9 : vector<256x128xf32>
    %11 = arith.truncf %10 : vector<256x128xf32> to vector<256x128xbf16>
    %c0_7 = arith.constant 0 : index
    %c0_8 = arith.constant 0 : index
    %12 = vector.load %arg6[%c0_7, %c0_8] : memref<128x8xbf16, #tpu.memory_space<vmem>>, vector<128x8xbf16>
    %cst_9 = arith.constant dense<0.000000e+00> : vector<256x8xf32>
    %13 = tpu.matmul %11, %12, %cst_9 {dimension_numbers = #tpu.dot_dimension_numbers<[1], [0], [0], [1], [0, 0, 1, 1], [], []>} : vector<256x128xbf16>, vector<128x8xbf16>, vector<256x8xf32> -> vector<256x8xf32>
    %c0_10 = arith.constant 0 : index
    %c0_11 = arith.constant 0 : index
    %14 = vector.load %arg7[%c0_10, %c0_11] : memref<1x8xf32, #tpu.memory_space<vmem>>, vector<1x8xf32>
    %15 = vector.broadcast %14 : vector<1x8xf32> to vector<256x8xf32>
    %16 = arith.addf %13, %15 : vector<256x8xf32>
    %17 = vector.extract_strided_slice %16 {offsets = [0, 0], sizes = [256, 4], strides = [1, 1]} : vector<256x8xf32> to vector<256x4xf32>
    %18 = vector.extract_strided_slice %16 {offsets = [0, 4], sizes = [256, 4], strides = [1, 1]} : vector<256x8xf32> to vector<256x4xf32>
    %c0_12 = arith.constant 0 : index
    %c0_13 = arith.constant 0 : index
    %19 = vector.load %arg3[%c0_12, %c0_13] : memref<256x4xf32, #tpu.memory_space<vmem>>, vector<256x4xf32>
    %20 = math.exp %17 : vector<256x4xf32>
    %21 = arith.mulf %19, %20 : vector<256x4xf32>
    %22 = arith.addf %21, %18 : vector<256x4xf32>
    %c0_14 = arith.constant 0 : index
    %c0_15 = arith.constant 0 : index
    %23 = vector.load %arg9[%c0_14, %c0_15] : memref<256x4xf32, #tpu.memory_space<vmem>>, vector<256x4xf32>
    tpu.vector_store %arg9[%c0_14, %c0_15], %22 {strides = array<i32>} : memref<256x4xf32, #tpu.memory_space<vmem>>, vector<256x4xf32>,
    %c256_i32 = arith.constant 256 : i32
    %24 = arith.muli %arg0, %c256_i32 : i32
    %25 = tpu.iota {dimensions = array<i32: 0>} : vector<48x256xi32>
    %26 = tpu.iota {dimensions = array<i32: 1>} : vector<1x256xi32>
    %27 = vector.broadcast %24 : i32 to vector<1x256xi32>
    %28 = arith.addi %26, %27 : vector<1x256xi32>
    %c320_i32 = arith.constant 320 : i32
    %29 = vector.broadcast %c320_i32 : i32 to vector<1x256xi32>
    %30 = arith.cmpi slt, %28, %29 : vector<1x256xi32>
    %c0_16 = arith.constant 0 : index
    %c0_17 = arith.constant 0 : index
    %31 = vector.load %arg1[%c0_16, %c0_17] : memref<1x256xi32, #tpu.memory_space<vmem>>, vector<1x256xi32>
    %32 = vector.broadcast %31 : vector<1x256xi32> to vector<48x256xi32>
    %33 = arith.cmpi eq, %25, %32 : vector<48x256xi32>
    %34 = vector.broadcast %30 : vector<1x256xi1> to vector<48x256xi1>
    %35 = arith.andi %33, %34 : vector<48x256xi1>
    %cst_18 = arith.constant 1.000000e+00 : f32
    %cst_19 = arith.constant 0.000000e+00 : f32
    %36 = vector.broadcast %cst_18 : f32 to vector<48x256xf32>
    %37 = vector.broadcast %cst_19 : f32 to vector<48x256xf32>
    %38 = arith.select %35, %36, %37 : vector<48x256xi1>, vector<48x256xf32>
    %39 = arith.truncf %38 : vector<48x256xf32> to vector<48x256xbf16>
    %c0_20 = arith.constant 0 : index
    %c0_21 = arith.constant 0 : index
    %40 = vector.load %arg8[%c0_20, %c0_21] : memref<48x8xf32, #tpu.memory_space<vmem>>, vector<48x8xf32>
    %41 = arith.truncf %16 : vector<256x8xf32> to vector<256x8xbf16>
    %cst_22 = arith.constant dense<0.000000e+00> : vector<48x8xf32>
    %42 = tpu.matmul %39, %41, %cst_22 {dimension_numbers = #tpu.dot_dimension_numbers<[1], [0], [0], [1], [0, 0, 1, 1], [], []>} : vector<48x256xbf16>, vector<256x8xbf16>, vector<48x8xf32> -> vector<48x8xf32>
    %43 = arith.addf %40, %42 : vector<48x8xf32>
    %c0_23 = arith.constant 0 : index
    %c0_24 = arith.constant 0 : index
    %44 = vector.load %arg8[%c0_23, %c0_24] : memref<48x8xf32, #tpu.memory_space<vmem>>, vector<48x8xf32>
    tpu.vector_store %arg8[%c0_23, %c0_24], %43 {strides = array<i32>} : memref<48x8xf32, #tpu.memory_space<vmem>>, vector<48x8xf32>,
    return
  }
  func.func @transform_0(%arg0: i32) -> (i32, i32) {
    %c0_i32 = arith.constant 0 : i32
    %c0_i32_0 = arith.constant 0 : i32
    return %c0_i32, %arg0 : i32, i32
  }
  func.func @transform_1(%arg0: i32) -> (i32, i32) {
    %c0_i32 = arith.constant 0 : i32
    %c0_i32_0 = arith.constant 0 : i32
    return %arg0, %c0_i32 : i32, i32
  }
  func.func @transform_2(%arg0: i32) -> (i32, i32) {
    %c0_i32 = arith.constant 0 : i32
    %c0_i32_0 = arith.constant 0 : i32
    return %arg0, %c0_i32 : i32, i32
  }
  func.func @transform_3(%arg0: i32) -> (i32, i32) {
    %c0_i32 = arith.constant 0 : i32
    %c0_i32_0 = arith.constant 0 : i32
    %c0_i32_1 = arith.constant 0 : i32
    return %c0_i32, %c0_i32_0 : i32, i32
  }
  func.func @transform_4(%arg0: i32) -> (i32, i32) {
    %c0_i32 = arith.constant 0 : i32
    %c0_i32_0 = arith.constant 0 : i32
    %c0_i32_1 = arith.constant 0 : i32
    return %c0_i32, %c0_i32_0 : i32, i32
  }
  func.func @transform_5(%arg0: i32) -> (i32, i32) {
    %c0_i32 = arith.constant 0 : i32
    %c0_i32_0 = arith.constant 0 : i32
    %c0_i32_1 = arith.constant 0 : i32
    return %c0_i32, %c0_i32_0 : i32, i32
  }
  func.func @transform_6(%arg0: i32) -> (i32, i32) {
    %c0_i32 = arith.constant 0 : i32
    %c0_i32_0 = arith.constant 0 : i32
    %c0_i32_1 = arith.constant 0 : i32
    return %c0_i32, %c0_i32_0 : i32, i32
  }
  func.func @transform_7(%arg0: i32) -> (i32, i32) {
    %c0_i32 = arith.constant 0 : i32
    %c0_i32_0 = arith.constant 0 : i32
    %c0_i32_1 = arith.constant 0 : i32
    return %c0_i32, %c0_i32_0 : i32, i32
  }
  func.func @transform_8(%arg0: i32) -> (i32, i32) {
    %c0_i32 = arith.constant 0 : i32
    %c0_i32_0 = arith.constant 0 : i32
    return %arg0, %c0_i32 : i32, i32
  }
}

module attributes {stable_mosaic.version = 11 : i64} {
  func.func @_node_kernel(%arg0: i32, %arg1: memref<48x4xbf16, #tpu.memory_space<vmem>>, %arg2: memref<48x8xbf16, #tpu.memory_space<vmem>>, %arg3: memref<48x4xf32, #tpu.memory_space<vmem>>, %arg4: memref<4x128xbf16, #tpu.memory_space<vmem>>, %arg5: memref<8x128xbf16, #tpu.memory_space<vmem>>, %arg6: memref<1x128xf32, #tpu.memory_space<vmem>>, %arg7: memref<128x8xbf16, #tpu.memory_space<vmem>>, %arg8: memref<1x8xf32, #tpu.memory_space<vmem>>, %arg9: memref<48x4xf32, #tpu.memory_space<vmem>>) attributes {dimension_semantics = [#tpu.dimension_semantics<parallel>], iteration_bounds = array<i64: 1>, scalar_prefetch = 0 : i64, scratch_operands = 0 : i64, tpu.core_type = #tpu.core_type<tc>, window_params = [{transform_indices = @transform_0, window_bounds = array<i64: 48, 4>}, {transform_indices = @transform_1, window_bounds = array<i64: 48, 8>}, {transform_indices = @transform_2, window_bounds = array<i64: 48, 4>}, {pipeline_mode = #tpu.pipeline_mode<synchronous>, transform_indices = @transform_3, window_bounds = array<i64: 4, 128>}, {pipeline_mode = #tpu.pipeline_mode<synchronous>, transform_indices = @transform_4, window_bounds = array<i64: 8, 128>}, {pipeline_mode = #tpu.pipeline_mode<synchronous>, transform_indices = @transform_5, window_bounds = array<i64: 1, 128>}, {pipeline_mode = #tpu.pipeline_mode<synchronous>, transform_indices = @transform_6, window_bounds = array<i64: 128, 8>}, {pipeline_mode = #tpu.pipeline_mode<synchronous>, transform_indices = @transform_7, window_bounds = array<i64: 1, 8>}, {transform_indices = @transform_8, window_bounds = array<i64: 48, 4>}]} {
    %c0 = arith.constant 0 : index
    %c0_0 = arith.constant 0 : index
    %0 = vector.load %arg1[%c0, %c0_0] : memref<48x4xbf16, #tpu.memory_space<vmem>>, vector<48x4xbf16>
    %c0_1 = arith.constant 0 : index
    %c0_2 = arith.constant 0 : index
    %1 = vector.load %arg4[%c0_1, %c0_2] : memref<4x128xbf16, #tpu.memory_space<vmem>>, vector<4x128xbf16>
    %cst = arith.constant dense<0.000000e+00> : vector<48x128xf32>
    %2 = tpu.matmul %0, %1, %cst {dimension_numbers = #tpu.dot_dimension_numbers<[1], [0], [0], [1], [0, 0, 1, 1], [], []>} : vector<48x4xbf16>, vector<4x128xbf16>, vector<48x128xf32> -> vector<48x128xf32>
    %c0_3 = arith.constant 0 : index
    %c0_4 = arith.constant 0 : index
    %3 = vector.load %arg2[%c0_3, %c0_4] : memref<48x8xbf16, #tpu.memory_space<vmem>>, vector<48x8xbf16>
    %c0_5 = arith.constant 0 : index
    %c0_6 = arith.constant 0 : index
    %4 = vector.load %arg5[%c0_5, %c0_6] : memref<8x128xbf16, #tpu.memory_space<vmem>>, vector<8x128xbf16>
    %cst_7 = arith.constant dense<0.000000e+00> : vector<48x128xf32>
    %5 = tpu.matmul %3, %4, %cst_7 {dimension_numbers = #tpu.dot_dimension_numbers<[1], [0], [0], [1], [0, 0, 1, 1], [], []>} : vector<48x8xbf16>, vector<8x128xbf16>, vector<48x128xf32> -> vector<48x128xf32>
    %6 = arith.addf %2, %5 : vector<48x128xf32>
    %c0_8 = arith.constant 0 : index
    %c0_9 = arith.constant 0 : index
    %7 = vector.load %arg6[%c0_8, %c0_9] : memref<1x128xf32, #tpu.memory_space<vmem>>, vector<1x128xf32>
    %8 = vector.broadcast %7 : vector<1x128xf32> to vector<48x128xf32>
    %9 = arith.addf %6, %8 : vector<48x128xf32>
    %cst_10 = arith.constant 0.000000e+00 : f32
    %10 = vector.broadcast %cst_10 : f32 to vector<48x128xf32>
    %11 = arith.maximumf %9, %10 : vector<48x128xf32>
    %12 = arith.truncf %11 : vector<48x128xf32> to vector<48x128xbf16>
    %c0_11 = arith.constant 0 : index
    %c0_12 = arith.constant 0 : index
    %13 = vector.load %arg7[%c0_11, %c0_12] : memref<128x8xbf16, #tpu.memory_space<vmem>>, vector<128x8xbf16>
    %cst_13 = arith.constant dense<0.000000e+00> : vector<48x8xf32>
    %14 = tpu.matmul %12, %13, %cst_13 {dimension_numbers = #tpu.dot_dimension_numbers<[1], [0], [0], [1], [0, 0, 1, 1], [], []>} : vector<48x128xbf16>, vector<128x8xbf16>, vector<48x8xf32> -> vector<48x8xf32>
    %c0_14 = arith.constant 0 : index
    %c0_15 = arith.constant 0 : index
    %15 = vector.load %arg8[%c0_14, %c0_15] : memref<1x8xf32, #tpu.memory_space<vmem>>, vector<1x8xf32>
    %16 = vector.broadcast %15 : vector<1x8xf32> to vector<48x8xf32>
    %17 = arith.addf %14, %16 : vector<48x8xf32>
    %18 = vector.extract_strided_slice %17 {offsets = [0, 0], sizes = [48, 4], strides = [1, 1]} : vector<48x8xf32> to vector<48x4xf32>
    %19 = vector.extract_strided_slice %17 {offsets = [0, 4], sizes = [48, 4], strides = [1, 1]} : vector<48x8xf32> to vector<48x4xf32>
    %c0_16 = arith.constant 0 : index
    %c0_17 = arith.constant 0 : index
    %20 = vector.load %arg3[%c0_16, %c0_17] : memref<48x4xf32, #tpu.memory_space<vmem>>, vector<48x4xf32>
    %21 = math.exp %18 : vector<48x4xf32>
    %22 = arith.mulf %20, %21 : vector<48x4xf32>
    %23 = arith.addf %22, %19 : vector<48x4xf32>
    %c0_18 = arith.constant 0 : index
    %c0_19 = arith.constant 0 : index
    %24 = vector.load %arg9[%c0_18, %c0_19] : memref<48x4xf32, #tpu.memory_space<vmem>>, vector<48x4xf32>
    tpu.vector_store %arg9[%c0_18, %c0_19], %23 {strides = array<i32>} : memref<48x4xf32, #tpu.memory_space<vmem>>, vector<48x4xf32>,
    return
  }
  func.func @transform_0(%arg0: i32) -> (i32, i32) {
    %c0_i32 = arith.constant 0 : i32
    %c0_i32_0 = arith.constant 0 : i32
    return %arg0, %c0_i32 : i32, i32
  }
  func.func @transform_1(%arg0: i32) -> (i32, i32) {
    %c0_i32 = arith.constant 0 : i32
    %c0_i32_0 = arith.constant 0 : i32
    return %arg0, %c0_i32 : i32, i32
  }
  func.func @transform_2(%arg0: i32) -> (i32, i32) {
    %c0_i32 = arith.constant 0 : i32
    %c0_i32_0 = arith.constant 0 : i32
    return %arg0, %c0_i32 : i32, i32
  }
  func.func @transform_3(%arg0: i32) -> (i32, i32) {
    %c0_i32 = arith.constant 0 : i32
    %c0_i32_0 = arith.constant 0 : i32
    %c0_i32_1 = arith.constant 0 : i32
    return %c0_i32, %c0_i32_0 : i32, i32
  }
  func.func @transform_4(%arg0: i32) -> (i32, i32) {
    %c0_i32 = arith.constant 0 : i32
    %c0_i32_0 = arith.constant 0 : i32
    %c0_i32_1 = arith.constant 0 : i32
    return %c0_i32, %c0_i32_0 : i32, i32
  }
  func.func @transform_5(%arg0: i32) -> (i32, i32) {
    %c0_i32 = arith.constant 0 : i32
    %c0_i32_0 = arith.constant 0 : i32
    %c0_i32_1 = arith.constant 0 : i32
    return %c0_i32, %c0_i32_0 : i32, i32
  }
  func.func @transform_6(%arg0: i32) -> (i32, i32) {
    %c0_i32 = arith.constant 0 : i32
    %c0_i32_0 = arith.constant 0 : i32
    %c0_i32_1 = arith.constant 0 : i32
    return %c0_i32, %c0_i32_0 : i32, i32
  }
  func.func @transform_7(%arg0: i32) -> (i32, i32) {
    %c0_i32 = arith.constant 0 : i32
    %c0_i32_0 = arith.constant 0 : i32
    %c0_i32_1 = arith.constant 0 : i32
    return %c0_i32, %c0_i32_0 : i32, i32
  }
  func.func @transform_8(%arg0: i32) -> (i32, i32) {
    %c0_i32 = arith.constant 0 : i32
    %c0_i32_0 = arith.constant 0 : i32
    return %arg0, %c0_i32 : i32, i32
  }
}

</mosaic_0001>

<llo_original>
// kernel: grevnet_forward.3
$region0: #{grevnet_forward.3}
  #allocation0 [shape = 'u32[]', space=smem, size = 0x4, offset = 0x4, fixed_abs, tag = 'smem constant byte address 0x4 - core index']
  #allocation1 [shape = 'u32[144,128]{1,0:T(1,128)}', space=vmem, size = 0x12000, scoped, tag = 'internal scratch']
  %s0 = inlined_call_operand.vmem [shape: bf16[48,4], index: 0, kind: input, shape index: {}]
  %s1 = inlined_call_operand.vmem [shape: bf16[48,8], index: 1, kind: input, shape index: {}]
  %s2 = inlined_call_operand.vmem [shape: f32[48,4], index: 2, kind: input, shape index: {}, may-alias: {2,8}]
  %s3 = inlined_call_operand.vmem [shape: bf16[4,128], index: 3, kind: input, shape index: {}]
  %s4 = inlined_call_operand.vmem [shape: bf16[8,128], index: 4, kind: input, shape index: {}]
  %s5 = inlined_call_operand.vmem [shape: f32[1,128], index: 5, kind: input, shape index: {}]
  %s6 = inlined_call_operand.vmem [shape: bf16[128,8], index: 6, kind: input, shape index: {}]
  %s7 = inlined_call_operand.vmem [shape: f32[1,8], index: 7, kind: input, shape index: {}]
  %s8 = inlined_call_operand.vmem [shape: f32[48,4], index: 8, kind: output, shape index: {}, may-alias: {2,8}]
  %s9 = sld [smem:[#allocation0]]
  $region42: #{grevnet_forward.3} parent=0
    _
  %s11 = ssub.s32 1, %s9
  %s12 = scalar_select 0, %s11, %s9
  // Predicated region
  $region2: #{grevnet_forward.3} parent=0 // pred_check
    _
  $region3: #{grevnet_forward.3} parent=0 // pred_check_branch
    %14 = sbr.rel (0) target = $region5
  $region4: #{grevnet_forward.3} parent=0 // pred_region
    _
  $region5: #{grevnet_forward.3} parent=0 // pred_fallthru
    _
  // Predicated region
  $region6: #{grevnet_forward.3} parent=0 // pred_check
    _
  $region7: #{grevnet_forward.3} parent=0 // pred_check_branch
    %16 = sbr.rel (0) target = $region9
  $region8: #{grevnet_forward.3} parent=0 // pred_region
    _
  $region9: #{grevnet_forward.3} parent=0 // pred_fallthru
    _
  // Predicated region
  $region10: #{grevnet_forward.3} parent=0 // pred_check
    _
  $region11: #{grevnet_forward.3} parent=0 // pred_check_branch
    %18 = sbr.rel (0) target = $region13
  $region12: #{grevnet_forward.3} parent=0 // pred_region
    _
  $region13: #{grevnet_forward.3} parent=0 // pred_fallthru
    _
  // Predicated region
  $region14: #{grevnet_forward.3} parent=0 // pred_check
    _
  $region15: #{grevnet_forward.3} parent=0 // pred_check_branch
    %20 = sbr.rel (0) target = $region17
  $region16: #{grevnet_forward.3} parent=0 // pred_region
    _
  $region17: #{grevnet_forward.3} parent=0 // pred_fallthru
    _
  // Predicated region
  $region18: #{grevnet_forward.3} parent=0 // pred_check
    _
  $region19: #{grevnet_forward.3} parent=0 // pred_check_branch
    %22 = sbr.rel (0) target = $region21
  $region20: #{grevnet_forward.3} parent=0 // pred_region
    _
  $region21: #{grevnet_forward.3} parent=0 // pred_fallthru
    _
  // Predicated region
  $region22: #{grevnet_forward.3} parent=0 // pred_check
    _
  $region23: #{grevnet_forward.3} parent=0 // pred_check_branch
    %24 = sbr.rel (0) target = $region25
  $region24: #{grevnet_forward.3} parent=0 // pred_region
    _
  $region25: #{grevnet_forward.3} parent=0 // pred_fallthru
    _
  // Predicated region
  $region26: #{grevnet_forward.3} parent=0 // pred_check
    _
  $region27: #{grevnet_forward.3} parent=0 // pred_check_branch
    %26 = sbr.rel (0) target = $region29
  $region28: #{grevnet_forward.3} parent=0 // pred_region
    _
  $region29: #{grevnet_forward.3} parent=0 // pred_fallthru
    _
  // Predicated region
  $region30: #{grevnet_forward.3} parent=0 // pred_check
    _
  $region31: #{grevnet_forward.3} parent=0 // pred_check_branch
    %28 = sbr.rel (0) target = $region33
  $region32: #{grevnet_forward.3} parent=0 // pred_region
    _
  $region33: #{grevnet_forward.3} parent=0 // pred_fallthru
    _
  %v30 = vld [vmem:[%s0] sm:$0xf]
  %v31 = vld [vmem:[%s0 + $0x4] sm:$0xf]
  %v32 = vld [vmem:[%s0 + $0x8] sm:$0xf]
  %v33 = vld [vmem:[%s0 + $0xc] sm:$0xf]
  %v34 = vld [vmem:[%s0 + $0x10] sm:$0xf]
  %v35 = vld [vmem:[%s0 + $0x14] sm:$0xf]
  %v36 = vld [vmem:[%s3] sm:$0x3]
  %v37 = vld [vmem:[%s1] sm:$0xf]
  %v38 = vld [vmem:[%s1 + $0x4] sm:$0xf]
  %v39 = vld [vmem:[%s1 + $0x8] sm:$0xf]
  %v40 = vld [vmem:[%s1 + $0xc] sm:$0xf]
  %v41 = vld [vmem:[%s1 + $0x10] sm:$0xf]
  %v42 = vld [vmem:[%s1 + $0x14] sm:$0xf]
  %v43 = vld [vmem:[%s4] sm:$0xf]
  %v50 = vunpack.c.l.b16 %v37
  %v51 = vunpack.c.l.b16 %v38
  %v52 = vunpack.c.l.b16 %v39
  %v53 = vunpack.c.l.b16 %v40
  %v54 = vunpack.c.l.b16 %v41
  %v55 = vunpack.c.l.b16 %v42
  %v56 = vpack.c.b16 %v51, %v50
  %v57 = vpack.c.b16 %v53, %v52
  %v58 = vpack.c.b16 %v55, %v54
  %vm59 = vcmask 64512
  %v61 = vsel %vm59, %v56, 0
  %v64 = vsel %vm59, %v57, 0
  %v67 = vsel %vm59, %v58, 0
  %vm69 = vcmask 1043456
  %v71 = vsel %vm69, %v43, 0
  %73 = vmatprep.subr.bf16.mxu0 0
  %74 = vmatpush1.bf16.msra.mxu0 0
  %75 = vmatprep.subr.bf16.mxu0 0
  %76 = vmatpush1.bf16.msra.mxu0 0
  %77 = vmatprep.subr.bf16.mxu0 0
  %78 = vmatpush1.bf16.msra.mxu0 0
  %79 = vmatprep.subr.bf16.mxu0 0
  %80 = vmatpush1.bf16.msra.mxu0 0
  %81 = vmatprep.subr.bf16.mxu0 0
  %82 = vmatpush1.bf16.msra.mxu0 0
  %83 = vmatprep.subr.bf16.mxu0 0
  %84 = vmatpush1.bf16.msra.mxu0 0
  %85 = vmatprep.subr.bf16.mxu0 0
  %86 = vmatpush1.bf16.msra.mxu0 0
  %87 = vmatprep.subr.bf16.mxu0 0
  %88 = vmatpush1.bf16.msra.mxu0 %v71
  %89 = vmatprep.subr.bf16.mxu0 0
  %90 = vmatpush2.bf16.msra.mxu0 0
  %91 = vmatprep.subr.bf16.mxu0 0
  %92 = vmatpush2.bf16.msra.mxu0 0
  %93 = vmatprep.subr.bf16.mxu0 0
  %94 = vmatpush2.bf16.msra.mxu0 0
  %95 = vmatprep.subr.bf16.mxu0 0
  %96 = vmatpush2.bf16.msra.mxu0 0
  %97 = vmatprep.subr.bf16.mxu0 0
  %98 = vmatpush2.bf16.msra.mxu0 0
  %99 = vmatprep.subr.bf16.mxu0 0
  %100 = vmatpush2.bf16.msra.mxu0 0
  %101 = vmatprep.subr.bf16.mxu0 0
  %102 = vmatpush2.bf16.msra.mxu0 0
  %103 = vmatprep.subr.bf16.mxu0 0
  %104 = vmatpush2.bf16.msra.mxu0 0
  %105 = vmatprep.mubr.bf16.mxu0 0
  %106 = vmatmul.mubr.bf16.gmra.mxu0 %v61
  %v107 = vpop.f32.mrf.mxu0
  %v108 = vadd.f32 0.0, %v107
  %v109 = vpop.f32.mrf.mxu0
  %v110 = vpop.f32.mrf.mxu0
  %v111 = vadd.f32 0.0, %v110
  %v112 = vpop.f32.mrf.mxu0
  %113 = vmatprep.mubr.bf16.mxu0 0
  %114 = vmatmul.mubr.bf16.gmra.mxu0 %v64
  %v115 = vpop.f32.mrf.mxu0
  %v116 = vadd.f32 0.0, %v115
  %v117 = vpop.f32.mrf.mxu0
  %v118 = vpop.f32.mrf.mxu0
  %v119 = vadd.f32 0.0, %v118
  %v120 = vpop.f32.mrf.mxu0
  %121 = vmatprep.mubr.bf16.mxu0 0
  %122 = vmatmul.mubr.bf16.gmra.mxu0 %v67
  %v123 = vpop.f32.mrf.mxu0
  %v124 = vadd.f32 0.0, %v123
  %v125 = vpop.f32.mrf.mxu0
  %v126 = vpop.f32.mrf.mxu0
  %v127 = vadd.f32 0.0, %v126
  %v128 = vpop.f32.mrf.mxu0
  %129 = vdwg.mxu0
  %v136 = vunpack.c.l.b16 %v30
  %v137 = vunpack.c.l.b16 %v31
  %v138 = vunpack.c.l.b16 %v32
  %v139 = vunpack.c.l.b16 %v33
  %v140 = vunpack.c.l.b16 %v34
  %v141 = vunpack.c.l.b16 %v35
  %v142 = vpack.c.b16 %v137, %v136
  %v143 = vpack.c.b16 %v139, %v138
  %v144 = vpack.c.b16 %v141, %v140
  %vm145 = vcmask 31744
  %v147 = vsel %vm145, %v142, 0
  %v150 = vsel %vm145, %v143, 0
  %v153 = vsel %vm145, %v144, 0
  %vm155 = vcmask 1041408
  %v157 = vsel %vm155, %v36, 0
  %159 = vmatprep.subr.bf16.mxu0 0
  %160 = vmatpush1.bf16.msra.mxu0 0
  %161 = vmatprep.subr.bf16.mxu0 0
  %162 = vmatpush1.bf16.msra.mxu0 0
  %163 = vmatprep.subr.bf16.mxu0 0
  %164 = vmatpush1.bf16.msra.mxu0 0
  %165 = vmatprep.subr.bf16.mxu0 0
  %166 = vmatpush1.bf16.msra.mxu0 0
  %167 = vmatprep.subr.bf16.mxu0 0
  %168 = vmatpush1.bf16.msra.mxu0 0
  %169 = vmatprep.subr.bf16.mxu0 0
  %170 = vmatpush1.bf16.msra.mxu0 0
  %171 = vmatprep.subr.bf16.mxu0 0
  %172 = vmatpush1.bf16.msra.mxu0 0
  %173 = vmatprep.subr.bf16.mxu0 0
  %174 = vmatpush1.bf16.msra.mxu0 %v157
  %175 = vmatprep.subr.bf16.mxu0 0
  %176 = vmatpush2.bf16.msra.mxu0 0
  %177 = vmatprep.subr.bf16.mxu0 0
  %178 = vmatpush2.bf16.msra.mxu0 0
  %179 = vmatprep.subr.bf16.mxu0 0
  %180 = vmatpush2.bf16.msra.mxu0 0
  %181 = vmatprep.subr.bf16.mxu0 0
  %182 = vmatpush2.bf16.msra.mxu0 0
  %183 = vmatprep.subr.bf16.mxu0 0
  %184 = vmatpush2.bf16.msra.mxu0 0
  %185 = vmatprep.subr.bf16.mxu0 0
  %186 = vmatpush2.bf16.msra.mxu0 0
  %187 = vmatprep.subr.bf16.mxu0 0
  %188 = vmatpush2.bf16.msra.mxu0 0
  %189 = vmatprep.subr.bf16.mxu0 0
  %190 = vmatpush2.bf16.msra.mxu0 0
  %191 = vmatprep.mubr.bf16.mxu0 0
  %192 = vmatmul.mubr.bf16.gmra.mxu0 %v147
  %v193 = vpop.f32.mrf.mxu0
  %v194 = vadd.f32 %v108, %v193
  %v195 = vpop.f32.mrf.mxu0
  %v196 = vpop.f32.mrf.mxu0
  %v197 = vadd.f32 %v111, %v196
  %v198 = vpop.f32.mrf.mxu0
  %199 = vmatprep.mubr.bf16.mxu0 0
  %200 = vmatmul.mubr.bf16.gmra.mxu0 %v150
  %v201 = vpop.f32.mrf.mxu0
  %v202 = vadd.f32 %v116, %v201
  %v203 = vpop.f32.mrf.mxu0
  %v204 = vpop.f32.mrf.mxu0
  %v205 = vadd.f32 %v119, %v204
  %v206 = vpop.f32.mrf.mxu0
  %207 = vmatprep.mubr.bf16.mxu0 0
  %208 = vmatmul.mubr.bf16.gmra.mxu0 %v153
  %v209 = vpop.f32.mrf.mxu0
  %v210 = vadd.f32 %v124, %v209
  %v211 = vpop.f32.mrf.mxu0
  %v212 = vpop.f32.mrf.mxu0
  %v213 = vadd.f32 %v127, %v212
  %v214 = vpop.f32.mrf.mxu0
  %215 = vdwg.mxu0
  %v216 = vld [vmem:[%s5] sm:$0x1]
  %v218 = vlaneseq
  %v219 = vshrl.u32 %v218, 7
  %v220 = vsub.s32 0, %v219
  %v221 = vrot.slane %v216, %v220
  %v223 = vadd.f32 %v194, %v221
  %v224 = vadd.f32 %v197, %v221
  %v225 = vadd.f32 %v202, %v221
  %v226 = vadd.f32 %v205, %v221
  %v227 = vadd.f32 %v210, %v221
  %v228 = vadd.f32 %v213, %v221
  %v229 = vmax.f32 %v223, 0.0
  %v230 = vmax.f32 %v224, 0.0
  %v231 = vmax.f32 %v225, 0.0
  %v232 = vmax.f32 %v226, 0.0
  %v233 = vmax.f32 %v227, 0.0
  %v234 = vmax.f32 %v228, 0.0
  %v235 = vpack.c.bf16 %v230, %v229
  %v236 = vpack.c.bf16 %v232, %v231
  %v237 = vpack.c.bf16 %v234, %v233
  %v238 = vld [vmem:[%s6] sm:$0xf]
  %v239 = vld [vmem:[%s6 + $0x4] sm:$0xf]
  %v240 = vld [vmem:[%s6 + $0x8] sm:$0xf]
  %v241 = vld [vmem:[%s6 + $0xc] sm:$0xf]
  %v242 = vld [vmem:[%s6 + $0x10] sm:$0xf]
  %v243 = vld [vmem:[%s6 + $0x14] sm:$0xf]
  %v244 = vld [vmem:[%s6 + $0x18] sm:$0xf]
  %v245 = vld [vmem:[%s6 + $0x1c] sm:$0xf]
  %v246 = vld [vmem:[%s6 + $0x20] sm:$0xf]
  %v247 = vld [vmem:[%s6 + $0x24] sm:$0xf]
  %v248 = vld [vmem:[%s6 + $0x28] sm:$0xf]
  %v249 = vld [vmem:[%s6 + $0x2c] sm:$0xf]
  %v250 = vld [vmem:[%s6 + $0x30] sm:$0xf]
  %v251 = vld [vmem:[%s6 + $0x34] sm:$0xf]
  %v252 = vld [vmem:[%s6 + $0x38] sm:$0xf]
  %v253 = vld [vmem:[%s6 + $0x3c] sm:$0xf]
  %v254 = vld [vmem:[%s7] sm:$0x1]
  %v256 = vlaneseq
  %v257 = vshrl.u32 %v256, 7
  %v258 = vsub.s32 0, %v257
  %v259 = vrot.slane %v254, %v258
  %v277 = vunpack.c.l.b16 %v238
  %v278 = vunpack.c.l.b16 %v239
  %v279 = vunpack.c.l.b16 %v240
  %v280 = vunpack.c.l.b16 %v241
  %v281 = vunpack.c.l.b16 %v242
  %v282 = vunpack.c.l.b16 %v243
  %v283 = vunpack.c.l.b16 %v244
  %v284 = vunpack.c.l.b16 %v245
  %v285 = vunpack.c.l.b16 %v246
  %v286 = vunpack.c.l.b16 %v247
  %v287 = vunpack.c.l.b16 %v248
  %v288 = vunpack.c.l.b16 %v249
  %v289 = vunpack.c.l.b16 %v250
  %v290 = vunpack.c.l.b16 %v251
  %v291 = vunpack.c.l.b16 %v252
  %v292 = vunpack.c.l.b16 %v253
  %v293 = vpack.c.b16 %v278, %v277
  %v294 = vpack.c.b16 %v280, %v279
  %v295 = vpack.c.b16 %v282, %v281
  %v296 = vpack.c.b16 %v284, %v283
  %v297 = vpack.c.b16 %v286, %v285
  %v298 = vpack.c.b16 %v288, %v287
  %v299 = vpack.c.b16 %v290, %v289
  %v300 = vpack.c.b16 %v292, %v291
  %309 = vmatprep.subr.bf16.mxu0 0
  %310 = vmatpush1.bf16.msra.mxu0 %v300
  %311 = vmatprep.subr.bf16.mxu0 0
  %312 = vmatpush1.bf16.msra.mxu0 %v299
  %313 = vmatprep.subr.bf16.mxu0 0
  %314 = vmatpush1.bf16.msra.mxu0 %v298
  %315 = vmatprep.subr.bf16.mxu0 0
  %316 = vmatpush1.bf16.msra.mxu0 %v297
  %317 = vmatprep.subr.bf16.mxu0 0
  %318 = vmatpush1.bf16.msra.mxu0 %v296
  %319 = vmatprep.subr.bf16.mxu0 0
  %320 = vmatpush1.bf16.msra.mxu0 %v295
  %321 = vmatprep.subr.bf16.mxu0 0
  %322 = vmatpush1.bf16.msra.mxu0 %v294
  %323 = vmatprep.subr.bf16.mxu0 0
  %324 = vmatpush1.bf16.msra.mxu0 %v293
  %325 = vmatprep.subr.bf16.mxu0 0
  %326 = vmatpush2.bf16.msra.mxu0 0
  %327 = vmatprep.subr.bf16.mxu0 0
  %328 = vmatpush2.bf16.msra.mxu0 0
  %329 = vmatprep.subr.bf16.mxu0 0
  %330 = vmatpush2.bf16.msra.mxu0 0
  %331 = vmatprep.subr.bf16.mxu0 0
  %332 = vmatpush2.bf16.msra.mxu0 0
  %333 = vmatprep.subr.bf16.mxu0 0
  %334 = vmatpush2.bf16.msra.mxu0 0
  %335 = vmatprep.subr.bf16.mxu0 0
  %336 = vmatpush2.bf16.msra.mxu0 0
  %337 = vmatprep.subr.bf16.mxu0 0
  %338 = vmatpush2.bf16.msra.mxu0 0
  %339 = vmatprep.subr.bf16.mxu0 0
  %340 = vmatpush2.bf16.msra.mxu0 0
  %341 = vmatprep.mubr.bf16.mxu0 0
  %342 = vmatmul.mubr.bf16.gmra.mxu0 %v235
  %v343 = vpop.f32.mrf.mxu0
  %v344 = vadd.f32 %v259, %v343
  %v345 = vpop.f32.mrf.mxu0
  %v346 = vpop.f32.mrf.mxu0
  %v347 = vadd.f32 %v259, %v346
  %v348 = vpop.f32.mrf.mxu0
  %349 = vmatprep.mubr.bf16.mxu0 0
  %350 = vmatmul.mubr.bf16.gmra.mxu0 %v236
  %v351 = vpop.f32.mrf.mxu0
  %v352 = vadd.f32 %v259, %v351
  %v353 = vpop.f32.mrf.mxu0
  %v354 = vpop.f32.mrf.mxu0
  %v355 = vadd.f32 %v259, %v354
  %v356 = vpop.f32.mrf.mxu0
  %357 = vmatprep.mubr.bf16.mxu0 0
  %358 = vmatmul.mubr.bf16.gmra.mxu0 %v237
  %v359 = vpop.f32.mrf.mxu0
  %v360 = vadd.f32 %v259, %v359
  %v361 = vpop.f32.mrf.mxu0
  %v362 = vpop.f32.mrf.mxu0
  %v363 = vadd.f32 %v259, %v362
  %v364 = vpop.f32.mrf.mxu0
  %365 = vdwg.mxu0
  %v366 = vld [vmem:[%s2] sm:$0xff]
  %v367 = vld [vmem:[%s2 + $0x8] sm:$0xff]
  %v368 = vld [vmem:[%s2 + $0x10] sm:$0xff]
  %v369 = vld [vmem:[%s2 + $0x18] sm:$0xff]
  %v370 = vld [vmem:[%s2 + $0x20] sm:$0xff]
  %v371 = vld [vmem:[%s2 + $0x28] sm:$0xff]
  %v372 = vmul.f32 %v344, 1.442695
  %v373 = vpow.pop %v372
  %v374 = vmul.f32 %v347, 1.442695
  %v375 = vpow.pop %v374
  %v376 = vmul.f32 %v352, 1.442695
  %v377 = vpow.pop %v376
  %v378 = vmul.f32 %v355, 1.442695
  %v379 = vpow.pop %v378
  %v380 = vmul.f32 %v360, 1.442695
  %v381 = vpow.pop %v380
  %v382 = vmul.f32 %v363, 1.442695
  %v383 = vpow.pop %v382
  %v384 = vmul.f32 %v366, %v373
  %v385 = vmul.f32 %v367, %v375
  %v386 = vmul.f32 %v368, %v377
  %v387 = vmul.f32 %v369, %v379
  %v388 = vmul.f32 %v370, %v381
  %v389 = vmul.f32 %v371, %v383
  %396 = vrot.lane.b32.xlu0 %v344, 124
  %v397 = vpop.permute.xlu0 %396
  %398 = vrot.lane.b32.xlu0 %v347, 124
  %v399 = vpop.permute.xlu0 %398
  %400 = vrot.lane.b32.xlu0 %v352, 124
  %v401 = vpop.permute.xlu0 %400
  %402 = vrot.lane.b32.xlu0 %v355, 124
  %v403 = vpop.permute.xlu0 %402
  %404 = vrot.lane.b32.xlu0 %v360, 124
  %v405 = vpop.permute.xlu0 %404
  %406 = vrot.lane.b32.xlu0 %v363, 124
  %v407 = vpop.permute.xlu0 %406
  %v414 = vadd.f32 %v384, %v397
  %v415 = vadd.f32 %v385, %v399
  %v416 = vadd.f32 %v386, %v401
  %v417 = vadd.f32 %v387, %v403
  %v418 = vadd.f32 %v388, %v405
  %v419 = vadd.f32 %v389, %v407
  %420 = vst.msk [vmem:[%s8] sm:$0xff] %vm145, %v414
  %421 = vst.msk [vmem:[%s8 + $0x8] sm:$0xff] %vm145, %v415
  %422 = vst.msk [vmem:[%s8 + $0x10] sm:$0xff] %vm145, %v416
  %423 = vst.msk [vmem:[%s8 + $0x18] sm:$0xff] %vm145, %v417
  %424 = vst.msk [vmem:[%s8 + $0x20] sm:$0xff] %vm145, %v418
  %425 = vst.msk [vmem:[%s8 + $0x28] sm:$0xff] %vm145, %v419
  // Predicated region
  $region34: #{grevnet_forward.3} parent=0 // pred_check
    _
  $region35: #{grevnet_forward.3} parent=0 // pred_check_branch
    %427 = sbr.rel (0) target = $region37
  $region36: #{grevnet_forward.3} parent=0 // pred_region
    _
  $region37: #{grevnet_forward.3} parent=0 // pred_fallthru
    _
  // Predicated region
  $region38: #{grevnet_forward.3} parent=0 // pred_check
    _
  $region39: #{grevnet_forward.3} parent=0 // pred_check_branch
    %429 = sbr.rel (0) target = $region41
  $region40: #{grevnet_forward.3} parent=0 // pred_region
    _
  $region41: #{grevnet_forward.3} parent=0 // pred_fallthru
    _

// kernel: grevnet_forward.2
$region0: #{grevnet_forward.2}
  #allocation0 [shape = 'u32[]', space=smem, size = 0x4, offset = 0x4, fixed_abs, tag = 'smem constant byte address 0x4 - core index']
  #allocation1 [shape = 'u32[144,128]{1,0:T(1,128)}', space=vmem, size = 0x12000, scoped, tag = 'internal scratch']
  %s0 = inlined_call_operand.vmem [shape: s32[1,512], index: 0, kind: input, shape index: {}]
  %s1 = inlined_call_operand.vmem [shape: bf16[512,12], index: 1, kind: input, shape index: {}]
  %s2 = inlined_call_operand.vmem [shape: f32[512,4], index: 2, kind: input, shape index: {}, may-alias: {2,8}]
  %s3 = inlined_call_operand.vmem [shape: bf16[12,128], index: 3, kind: input, shape index: {}]
  %s4 = inlined_call_operand.vmem [shape: f32[1,128], index: 4, kind: input, shape index: {}]
  %s5 = inlined_call_operand.vmem [shape: bf16[128,8], index: 5, kind: input, shape index: {}]
  %s6 = inlined_call_operand.vmem [shape: f32[1,8], index: 6, kind: input, shape index: {}]
  %s7 = inlined_call_operand.vmem [shape: f32[48,8], index: 7, kind: output, shape index: {0}]
  %s8 = inlined_call_operand.vmem [shape: f32[512,4], index: 8, kind: output, shape index: {1}, may-alias: {2,8}]
  %9 = xla_tuple %s7, %s8
  %s10 = sld [smem:[#allocation0]]
  $region73: #{grevnet_forward.2} parent=0
    _
  %s12 = ssub.s32 1, %s10
  %s13 = scalar_select 0, %s12, %s10
  loop: start=0, step=1, limit=4
  $region2: #{grevnet_forward.2} parent=0 // loop_pre_header
    _
  $region3: #{grevnet_forward.2} parent=0 // loop_header
    %s15 = sphi 0, %s19
    %p16 = scmp.ge.s32.totalorder %s15, 4
    %s25 = sphi 0, %s27
    %s28 = sphi 0, %s25
    %s29 = sphi 0, %s28
    %s45 = sphi 0, %s29
    %s51 = sphi 0, %s53
    %s54 = sphi 0, %s51
    %s55 = sphi 0, %s54
    %s71 = sphi 0, %s55
    %s77 = sphi 0, %s79
    %s80 = sphi 0, %s77
    %s81 = sphi 0, %s80
    %s97 = sphi 0, %s81
    %s101 = sphi 0, %s101
    %s103 = sphi 0, %s101
    %s104 = sphi 0, %s103
    %s118 = sphi 0, %s104
    %s122 = sphi 0, %s122
    %s124 = sphi 0, %s122
    %s125 = sphi 0, %s124
    %s139 = sphi 0, %s125
    %s143 = sphi 0, %s143
    %s145 = sphi 0, %s143
    %s146 = sphi 0, %s145
    %s160 = sphi 0, %s146
    %s164 = sphi 0, %s164
    %s166 = sphi 0, %s164
    %s167 = sphi 0, %s166
    %s181 = sphi 0, %s167
    %s185 = sphi 0, %s185
    %s187 = sphi 0, %s185
    %s188 = sphi 0, %s187
    %s202 = sphi 0, %s188
    %s208 = sphi 0, %s210
    %s211 = sphi 0, %s208
    %s212 = sphi 0, %s211
    %s228 = sphi 0, %s212
  $region4: #{grevnet_forward.2} parent=0 // loop_header_branch
    %18 = sbr.rel (%p16) target = $region8
  $region5: #{grevnet_forward.2} parent=0 // loop_body
    %s20 = ssub.s32 %s15, 1
    %s21 = ssub.s32 %s15, 2
    %s22 = sadd.s32 %s15, 1
    %s23 = ssub.s32 %s15, %s22
    %p24 = scmp.eq.s32.totalorder %s23, 0
    %s26 = sadd.s32 %s25, 1
    %s27 = scalar_select %p24, %s25, %s26
    %p30 = pneg %p24
    %p31 = scmp.eq.s32.totalorder %s15, 1
    %p32 = por %p30, %p31
    %p33 = scmp.ne.s32.totalorder %s25, %s28
    %p34 = scmp.eq.s32.totalorder %s15, 0
    %p35 = por %p33, %p34
    %p36 = scmp.ne.s32.totalorder %s25, %s28
    %p37 = scmp.eq.s32.totalorder %s20, 1
    %p38 = por %p36, %p37
    %p39 = scmp.ne.s32.totalorder %s28, %s29
    %p40 = scmp.eq.s32.totalorder %s20, 0
    %p41 = por %p39, %p40
    %p42 = scmp.ne.s32.totalorder %s28, %s29
    %p43 = scmp.eq.s32.totalorder %s21, 1
    %p44 = por %p42, %p43
    %p46 = scmp.ne.s32.totalorder %s29, %s45
    %p47 = scmp.eq.s32.totalorder %s21, 0
    %p48 = por %p46, %p47
    %s49 = ssub.s32 %s15, %s22
    %p50 = scmp.eq.s32.totalorder %s49, 0
    %s52 = sadd.s32 %s51, 1
    %s53 = scalar_select %p50, %s51, %s52
    %p56 = pneg %p50
    %p57 = scmp.eq.s32.totalorder %s15, 1
    %p58 = por %p56, %p57
    %p59 = scmp.ne.s32.totalorder %s51, %s54
    %p60 = scmp.eq.s32.totalorder %s15, 0
    %p61 = por %p59, %p60
    %p62 = scmp.ne.s32.totalorder %s51, %s54
    %p63 = scmp.eq.s32.totalorder %s20, 1
    %p64 = por %p62, %p63
    %p65 = scmp.ne.s32.totalorder %s54, %s55
    %p66 = scmp.eq.s32.totalorder %s20, 0
    %p67 = por %p65, %p66
    %p68 = scmp.ne.s32.totalorder %s54, %s55
    %p69 = scmp.eq.s32.totalorder %s21, 1
    %p70 = por %p68, %p69
    %p72 = scmp.ne.s32.totalorder %s55, %s71
    %p73 = scmp.eq.s32.totalorder %s21, 0
    %p74 = por %p72, %p73
    %s75 = ssub.s32 %s15, %s22
    %p76 = scmp.eq.s32.totalorder %s75, 0
    %s78 = sadd.s32 %s77, 1
    %s79 = scalar_select %p76, %s77, %s78
    %p82 = pneg %p76
    %p83 = scmp.eq.s32.totalorder %s15, 1
    %p84 = por %p82, %p83
    %p85 = scmp.ne.s32.totalorder %s77, %s80
    %p86 = scmp.eq.s32.totalorder %s15, 0
    %p87 = por %p85, %p86
    %p88 = scmp.ne.s32.totalorder %s77, %s80
    %p89 = scmp.eq.s32.totalorder %s20, 1
    %p90 = por %p88, %p89
    %p91 = scmp.ne.s32.totalorder %s80, %s81
    %p92 = scmp.eq.s32.totalorder %s20, 0
    %p93 = por %p91, %p92
    %p94 = scmp.ne.s32.totalorder %s80, %s81
    %p95 = scmp.eq.s32.totalorder %s21, 1
    %p96 = por %p94, %p95
    %p98 = scmp.ne.s32.totalorder %s81, %s97
    %p99 = scmp.eq.s32.totalorder %s21, 0
    %p100 = por %p98, %p99
    %s102 = sadd.s32 %s101, 1
    %p105 = scmp.eq.s32.totalorder %s15, 1
    %p106 = scmp.ne.s32.totalorder %s101, %s103
    %p107 = scmp.eq.s32.totalorder %s15, 0
    %p108 = por %p106, %p107
    %p109 = scmp.ne.s32.totalorder %s101, %s103
    %p110 = scmp.eq.s32.totalorder %s20, 1
    %p111 = por %p109, %p110
    %p112 = scmp.ne.s32.totalorder %s103, %s104
    %p113 = scmp.eq.s32.totalorder %s20, 0
    %p114 = por %p112, %p113
    %p115 = scmp.ne.s32.totalorder %s103, %s104
    %p116 = scmp.eq.s32.totalorder %s21, 1
    %p117 = por %p115, %p116
    %p119 = scmp.ne.s32.totalorder %s104, %s118
    %p120 = scmp.eq.s32.totalorder %s21, 0
    %p121 = por %p119, %p120
    %s123 = sadd.s32 %s122, 1
    %p126 = scmp.eq.s32.totalorder %s15, 1
    %p127 = scmp.ne.s32.totalorder %s122, %s124
    %p128 = scmp.eq.s32.totalorder %s15, 0
    %p129 = por %p127, %p128
    %p130 = scmp.ne.s32.totalorder %s122, %s124
    %p131 = scmp.eq.s32.totalorder %s20, 1
    %p132 = por %p130, %p131
    %p133 = scmp.ne.s32.totalorder %s124, %s125
    %p134 = scmp.eq.s32.totalorder %s20, 0
    %p135 = por %p133, %p134
    %p136 = scmp.ne.s32.totalorder %s124, %s125
    %p137 = scmp.eq.s32.totalorder %s21, 1
    %p138 = por %p136, %p137
    %p140 = scmp.ne.s32.totalorder %s125, %s139
    %p141 = scmp.eq.s32.totalorder %s21, 0
    %p142 = por %p140, %p141
    %s144 = sadd.s32 %s143, 1
    %p147 = scmp.eq.s32.totalorder %s15, 1
    %p148 = scmp.ne.s32.totalorder %s143, %s145
    %p149 = scmp.eq.s32.totalorder %s15, 0
    %p150 = por %p148, %p149
    %p151 = scmp.ne.s32.totalorder %s143, %s145
    %p152 = scmp.eq.s32.totalorder %s20, 1
    %p153 = por %p151, %p152
    %p154 = scmp.ne.s32.totalorder %s145, %s146
    %p155 = scmp.eq.s32.totalorder %s20, 0
    %p156 = por %p154, %p155
    %p157 = scmp.ne.s32.totalorder %s145, %s146
    %p158 = scmp.eq.s32.totalorder %s21, 1
    %p159 = por %p157, %p158
    %p161 = scmp.ne.s32.totalorder %s146, %s160
    %p162 = scmp.eq.s32.totalorder %s21, 0
    %p163 = por %p161, %p162
    %s165 = sadd.s32 %s164, 1
    %p168 = scmp.eq.s32.totalorder %s15, 1
    %p169 = scmp.ne.s32.totalorder %s164, %s166
    %p170 = scmp.eq.s32.totalorder %s15, 0
    %p171 = por %p169, %p170
    %p172 = scmp.ne.s32.totalorder %s164, %s166
    %p173 = scmp.eq.s32.totalorder %s20, 1
    %p174 = por %p172, %p173
    %p175 = scmp.ne.s32.totalorder %s166, %s167
    %p176 = scmp.eq.s32.totalorder %s20, 0
    %p177 = por %p175, %p176
    %p178 = scmp.ne.s32.totalorder %s166, %s167
    %p179 = scmp.eq.s32.totalorder %s21, 1
    %p180 = por %p178, %p179
    %p182 = scmp.ne.s32.totalorder %s167, %s181
    %p183 = scmp.eq.s32.totalorder %s21, 0
    %p184 = por %p182, %p183
    %s186 = sadd.s32 %s185, 1
    %p189 = scmp.eq.s32.totalorder %s15, 1
    %p190 = scmp.ne.s32.totalorder %s185, %s187
    %p191 = scmp.eq.s32.totalorder %s15, 0
    %p192 = por %p190, %p191
    %p193 = scmp.ne.s32.totalorder %s185, %s187
    %p194 = scmp.eq.s32.totalorder %s20, 1
    %p195 = por %p193, %p194
    %p196 = scmp.ne.s32.totalorder %s187, %s188
    %p197 = scmp.eq.s32.totalorder %s20, 0
    %p198 = por %p196, %p197
    %p199 = scmp.ne.s32.totalorder %s187, %s188
    %p200 = scmp.eq.s32.totalorder %s21, 1
    %p201 = por %p199, %p200
    %p203 = scmp.ne.s32.totalorder %s188, %s202
    %p204 = scmp.eq.s32.totalorder %s21, 0
    %p205 = por %p203, %p204
    %s206 = ssub.s32 %s15, %s22
    %p207 = scmp.eq.s32.totalorder %s206, 0
    %s209 = sadd.s32 %s208, 1
    %s210 = scalar_select %p207, %s208, %s209
    %p213 = pneg %p207
    %p214 = scmp.eq.s32.totalorder %s15, 1
    %p215 = por %p213, %p214
    %p216 = scmp.ne.s32.totalorder %s208, %s211
    %p217 = scmp.eq.s32.totalorder %s15, 0
    %p218 = por %p216, %p217
    %p219 = scmp.ne.s32.totalorder %s208, %s211
    %p220 = scmp.eq.s32.totalorder %s20, 1
    %p221 = por %p219, %p220
    %p222 = scmp.ne.s32.totalorder %s211, %s212
    %p223 = scmp.eq.s32.totalorder %s20, 0
    %p224 = por %p222, %p223
    %p225 = scmp.ne.s32.totalorder %s211, %s212
    %p226 = scmp.eq.s32.totalorder %s21, 1
    %p227 = por %p225, %p226
    %p229 = scmp.ne.s32.totalorder %s212, %s228
    %p230 = scmp.eq.s32.totalorder %s21, 0
    %p231 = por %p229, %p230
    %p232 = scmp.le.s32.totalorder 1, %s15
    %p233 = scmp.lt.s32.totalorder %s15, 3
    %p234 = pnand %p232, %p233
    %p235 = pneg %p234
    // Predicated region
    $region9: #{grevnet_forward.2} parent=5 // pred_check
      _
    $region10: #{grevnet_forward.2} parent=5 // pred_check_branch
      %237 = sbr.rel (%p234) target = $region12
    $region11: #{grevnet_forward.2} parent=5 // pred_region
      %s238 = ssub.s32 %s15, 1
      // Predicated region
      $region13: #{grevnet_forward.2} parent=11 // pred_check
        %p239 = pneg %p114
      $region14: #{grevnet_forward.2} parent=11 // pred_check_branch
        %241 = sbr.rel (%p239) target = $region16
      $region15: #{grevnet_forward.2} parent=11 // pred_region
        _
      $region16: #{grevnet_forward.2} parent=11 // pred_fallthru
        _
      // Predicated region
      $region17: #{grevnet_forward.2} parent=11 // pred_check
        %p242 = pneg %p135
      $region18: #{grevnet_forward.2} parent=11 // pred_check_branch
        %244 = sbr.rel (%p242) target = $region20
      $region19: #{grevnet_forward.2} parent=11 // pred_region
        _
      $region20: #{grevnet_forward.2} parent=11 // pred_fallthru
        _
      // Predicated region
      $region21: #{grevnet_forward.2} parent=11 // pred_check
        %p245 = pneg %p156
      $region22: #{grevnet_forward.2} parent=11 // pred_check_branch
        %247 = sbr.rel (%p245) target = $region24
      $region23: #{grevnet_forward.2} parent=11 // pred_region
        _
      $region24: #{grevnet_forward.2} parent=11 // pred_fallthru
        _
      // Predicated region
      $region25: #{grevnet_forward.2} parent=11 // pred_check
        %p248 = pneg %p177
      $region26: #{grevnet_forward.2} parent=11 // pred_check_branch
        %250 = sbr.rel (%p248) target = $region28
      $region27: #{grevnet_forward.2} parent=11 // pred_region
        _
      $region28: #{grevnet_forward.2} parent=11 // pred_fallthru
        _
    $region12: #{grevnet_forward.2} parent=5 // pred_fallthru
      _
    %p251 = scmp.lt.s32.totalorder %s15, 2
    // Predicated region
    $region29: #{grevnet_forward.2} parent=5 // pred_check
      %p252 = pneg %p251
    $region30: #{grevnet_forward.2} parent=5 // pred_check_branch
      %254 = sbr.rel (%p252) target = $region32
    $region31: #{grevnet_forward.2} parent=5 // pred_region
      // Predicated region
      $region33: #{grevnet_forward.2} parent=31 // pred_check
        %p255 = pneg %p35
      $region34: #{grevnet_forward.2} parent=31 // pred_check_branch
        %257 = sbr.rel (%p255) target = $region36
      $region35: #{grevnet_forward.2} parent=31 // pred_region
        %s258 = smul.u32 2, %s15
        %p259 = scmp.lt.s32.totalorder %s258, 3
        %s260 = scalar_select %p259, %s258, 3
        %s261 = scalar_lea.vmem %s0, %s260
        %s262 = smul.u32 2, %s15
      $region36: #{grevnet_forward.2} parent=31 // pred_fallthru
        _
      // Predicated region
      $region37: #{grevnet_forward.2} parent=31 // pred_check
        %p263 = pneg %p61
      $region38: #{grevnet_forward.2} parent=31 // pred_check_branch
        %265 = sbr.rel (%p263) target = $region40
      $region39: #{grevnet_forward.2} parent=31 // pred_region
        %s266 = smul.u32 32, %s15
        %p267 = scmp.lt.s32.totalorder %s266, 63
        %s268 = scalar_select %p267, %s266, 63
        %s269 = smul.addr %s268, 4
        %s270 = scalar_lea.vmem %s1, %s269
        %s271 = smul.u32 32, %s15
      $region40: #{grevnet_forward.2} parent=31 // pred_fallthru
        _
      // Predicated region
      $region41: #{grevnet_forward.2} parent=31 // pred_check
        %p272 = pneg %p87
      $region42: #{grevnet_forward.2} parent=31 // pred_check_branch
        %274 = sbr.rel (%p272) target = $region44
      $region43: #{grevnet_forward.2} parent=31 // pred_region
        %s275 = smul.u32 32, %s15
        %p276 = scmp.lt.s32.totalorder %s275, 63
        %s277 = scalar_select %p276, %s275, 63
        %s278 = smul.addr %s277, 8
        %s279 = scalar_lea.vmem %s2, %s278
        %s280 = smul.u32 32, %s15
      $region44: #{grevnet_forward.2} parent=31 // pred_fallthru
        _
    $region32: #{grevnet_forward.2} parent=5 // pred_fallthru
      _
    %p281 = scmp.le.s32.totalorder 1, %s15
    %p282 = scmp.lt.s32.totalorder %s15, 3
    %p283 = pnand %p281, %p282
    %p284 = pneg %p283
    // Predicated region
    $region45: #{grevnet_forward.2} parent=5 // pred_check
      _
    $region46: #{grevnet_forward.2} parent=5 // pred_check_branch
      %286 = sbr.rel (%p283) target = $region48
    $region47: #{grevnet_forward.2} parent=5 // pred_region
      %s287 = ssub.s32 %s15, 1
      %s288 = smul.u32 2, %s20
      %p289 = scmp.lt.s32.totalorder %s288, 3
      %s290 = scalar_select %p289, %s288, 3
      %s291 = scalar_lea.vmem %s0, %s290
      %p292 = pneg %p41
      %p293 = pneg %p38
      %s294 = smul.u32 32, %s20
      %p295 = scmp.lt.s32.totalorder %s294, 63
      %s296 = scalar_select %p295, %s294, 63
      %s297 = smul.addr %s296, 4
      %s298 = scalar_lea.vmem %s1, %s297
      %p299 = pneg %p67
      %p300 = pneg %p64
      %s301 = smul.u32 32, %s20
      %p302 = scmp.lt.s32.totalorder %s301, 63
      %s303 = scalar_select %p302, %s301, 63
      %s304 = smul.addr %s303, 8
      %s305 = scalar_lea.vmem %s2, %s304
      %p306 = pneg %p93
      %p307 = pneg %p90
      %p308 = pneg %p114
      %p309 = pneg %p111
      %p310 = pneg %p135
      %p311 = pneg %p132
      %p312 = pneg %p156
      %p313 = pneg %p153
      %p314 = pneg %p177
      %p315 = pneg %p174
      %p316 = pneg %p198
      %p317 = pneg %p195
      %p318 = pneg %p224
      %p319 = pneg %p221
      %s320 = smul.u32 32, %s20
      %p321 = scmp.lt.s32.totalorder %s320, 63
      %s322 = scalar_select %p321, %s320, 63
      %s323 = smul.addr %s322, 8
      %s324 = scalar_lea.vmem %s8, %s323
      %s325 = smul.u32 2, %s20
      %p326 = scmp.lt.s32.totalorder %s325, 3
      %s327 = scalar_select %p326, %s325, 3
      %s328 = scalar_lea.vmem %s0, %s327
      %s329 = smul.u32 2, %s20
      %s330 = smul.u32 32, %s20
      %p331 = scmp.lt.s32.totalorder %s330, 63
      %s332 = scalar_select %p331, %s330, 63
      %s333 = smul.addr %s332, 4
      %s334 = scalar_lea.vmem %s1, %s333
      %s335 = smul.u32 32, %s20
      %s336 = smul.u32 32, %s20
      %p337 = scmp.lt.s32.totalorder %s336, 63
      %s338 = scalar_select %p337, %s336, 63
      %s339 = smul.addr %s338, 8
      %s340 = scalar_lea.vmem %s2, %s339
      %s341 = smul.u32 32, %s20
      %s342 = smul.u32 32, %s20
      %p343 = scmp.lt.s32.totalorder %s342, 63
      %s344 = scalar_select %p343, %s342, 63
      %s345 = smul.addr %s344, 8
      %s346 = scalar_lea.vmem %s8, %s345
      %s347 = smul.u32 32, %s20
      %p349 = scmp.eq.s32.totalorder %s20, 0
      // Predicated region
      $region49: #{grevnet_forward.2} parent=47 // pred_check
        %p350 = pneg %p349
      $region50: #{grevnet_forward.2} parent=47 // pred_check_branch
        %352 = sbr.rel (%p350) target = $region52
      $region51: #{grevnet_forward.2} parent=47 // pred_region
        %vm353 = vcmask 64512
        %354 = vst.msk [vmem:[%s7] sm:$0xff] %vm353, 0.0
        %355 = vst.msk [vmem:[%s7 + $0x8] sm:$0xff] %vm353, 0.0
        %356 = vst.msk [vmem:[%s7 + $0x10] sm:$0xff] %vm353, 0.0
        %357 = vst.msk [vmem:[%s7 + $0x18] sm:$0xff] %vm353, 0.0
        %358 = vst.msk [vmem:[%s7 + $0x20] sm:$0xff] %vm353, 0.0
        %359 = vst.msk [vmem:[%s7 + $0x28] sm:$0xff] %vm353, 0.0
      $region52: #{grevnet_forward.2} parent=47 // pred_fallthru
        _
      %v360 = vld [vmem:[%s334] sm:$0xf]
      %v361 = vld [vmem:[%s334 + $0x4] sm:$0xf]
      %v362 = vld [vmem:[%s334 + $0x8] sm:$0xf]
      %v363 = vld [vmem:[%s334 + $0xc] sm:$0xf]
      %v364 = vld [vmem:[%s334 + $0x10] sm:$0xf]
      %v365 = vld [vmem:[%s334 + $0x14] sm:$0xf]
      %v366 = vld [vmem:[%s334 + $0x18] sm:$0xf]
      %v367 = vld [vmem:[%s334 + $0x1c] sm:$0xf]
      %v368 = vld [vmem:[%s334 + $0x20] sm:$0xf]
      %v369 = vld [vmem:[%s334 + $0x24] sm:$0xf]
      %v370 = vld [vmem:[%s334 + $0x28] sm:$0xf]
      %v371 = vld [vmem:[%s334 + $0x2c] sm:$0xf]
      %v372 = vld [vmem:[%s334 + $0x30] sm:$0xf]
      %v373 = vld [vmem:[%s334 + $0x34] sm:$0xf]
      %v374 = vld [vmem:[%s334 + $0x38] sm:$0xf]
      %v375 = vld [vmem:[%s334 + $0x3c] sm:$0xf]
      %v376 = vld [vmem:[%s334 + $0x40] sm:$0xf]
      %v377 = vld [vmem:[%s334 + $0x44] sm:$0xf]
      %v378 = vld [vmem:[%s334 + $0x48] sm:$0xf]
      %v379 = vld [vmem:[%s334 + $0x4c] sm:$0xf]
      %v380 = vld [vmem:[%s334 + $0x50] sm:$0xf]
      %v381 = vld [vmem:[%s334 + $0x54] sm:$0xf]
      %v382 = vld [vmem:[%s334 + $0x58] sm:$0xf]
      %v383 = vld [vmem:[%s334 + $0x5c] sm:$0xf]
      %v384 = vld [vmem:[%s334 + $0x60] sm:$0xf]
      %v385 = vld [vmem:[%s334 + $0x64] sm:$0xf]
      %v386 = vld [vmem:[%s334 + $0x68] sm:$0xf]
      %v387 = vld [vmem:[%s334 + $0x6c] sm:$0xf]
      %v388 = vld [vmem:[%s334 + $0x70] sm:$0xf]
      %v389 = vld [vmem:[%s334 + $0x74] sm:$0xf]
      %v390 = vld [vmem:[%s334 + $0x78] sm:$0xf]
      %v391 = vld [vmem:[%s334 + $0x7c] sm:$0xf]
      %v392 = vld [vmem:[%s3] sm:$0xf]
      %v393 = vld [vmem:[%s3 + $0x4] sm:$0x3]
      %v394 = vld [vmem:[%s4] sm:$0x1]
      %v396 = vlaneseq
      %v397 = vshrl.u32 %v396, 7
      %v398 = vsub.s32 0, %v397
      %v399 = vrot.slane %v394, %v398
      %v433 = vunpack.c.l.b16 %v360
      %v434 = vunpack.c.l.b16 %v361
      %v435 = vunpack.c.l.b16 %v362
      %v436 = vunpack.c.l.b16 %v363
      %v437 = vunpack.c.l.b16 %v364
      %v438 = vunpack.c.l.b16 %v365
      %v439 = vunpack.c.l.b16 %v366
      %v440 = vunpack.c.l.b16 %v367
      %v441 = vunpack.c.l.b16 %v368
      %v442 = vunpack.c.l.b16 %v369
      %v443 = vunpack.c.l.b16 %v370
      %v444 = vunpack.c.l.b16 %v371
      %v445 = vunpack.c.l.b16 %v372
      %v446 = vunpack.c.l.b16 %v373
      %v447 = vunpack.c.l.b16 %v374
      %v448 = vunpack.c.l.b16 %v375
      %v449 = vunpack.c.l.b16 %v376
      %v450 = vunpack.c.l.b16 %v377
      %v451 = vunpack.c.l.b16 %v378
      %v452 = vunpack.c.l.b16 %v379
      %v453 = vunpack.c.l.b16 %v380
      %v454 = vunpack.c.l.b16 %v381
      %v455 = vunpack.c.l.b16 %v382
      %v456 = vunpack.c.l.b16 %v383
      %v457 = vunpack.c.l.b16 %v384
      %v458 = vunpack.c.l.b16 %v385
      %v459 = vunpack.c.l.b16 %v386
      %v460 = vunpack.c.l.b16 %v387
      %v461 = vunpack.c.l.b16 %v388
      %v462 = vunpack.c.l.b16 %v389
      %v463 = vunpack.c.l.b16 %v390
      %v464 = vunpack.c.l.b16 %v391
      %v465 = vpack.c.b16 %v434, %v433
      %v466 = vpack.c.b16 %v436, %v435
      %v467 = vpack.c.b16 %v438, %v437
      %v468 = vpack.c.b16 %v440, %v439
      %v469 = vpack.c.b16 %v442, %v441
      %v470 = vpack.c.b16 %v444, %v443
      %v471 = vpack.c.b16 %v446, %v445
      %v472 = vpack.c.b16 %v448, %v447
      %v473 = vpack.c.b16 %v450, %v449
      %v474 = vpack.c.b16 %v452, %v451
      %v475 = vpack.c.b16 %v454, %v453
      %v476 = vpack.c.b16 %v456, %v455
      %v477 = vpack.c.b16 %v458, %v457
      %v478 = vpack.c.b16 %v460, %v459
      %v479 = vpack.c.b16 %v462, %v461
      %v480 = vpack.c.b16 %v464, %v463
      %v483 = vunpack.c.l.b16 %v392
      %v484 = vunpack.c.l.b16 %v393
      %v485 = vpack.c.b16 %v484, %v483
      %vm486 = vcmask 97280
      %v488 = vsel %vm486, %v465, 0
      %v491 = vsel %vm486, %v466, 0
      %v494 = vsel %vm486, %v467, 0
      %v497 = vsel %vm486, %v468, 0
      %v500 = vsel %vm486, %v469, 0
      %v503 = vsel %vm486, %v470, 0
      %v506 = vsel %vm486, %v471, 0
      %v509 = vsel %vm486, %v472, 0
      %v512 = vsel %vm486, %v473, 0
      %v515 = vsel %vm486, %v474, 0
      %v518 = vsel %vm486, %v475, 0
      %v521 = vsel %vm486, %v476, 0
      %v524 = vsel %vm486, %v477, 0
      %v527 = vsel %vm486, %v478, 0
      %v530 = vsel %vm486, %v479, 0
      %v533 = vsel %vm486, %v480, 0
      %vm535 = vcmask 1045504
      %v537 = vsel %vm535, %v485, 0
      %539 = vmatprep.subr.bf16.mxu0 0
      %540 = vmatpush1.bf16.msra.mxu0 0
      %541 = vmatprep.subr.bf16.mxu0 0
      %542 = vmatpush1.bf16.msra.mxu0 0
      %543 = vmatprep.subr.bf16.mxu0 0
      %544 = vmatpush1.bf16.msra.mxu0 0
      %545 = vmatprep.subr.bf16.mxu0 0
      %546 = vmatpush1.bf16.msra.mxu0 0
      %547 = vmatprep.subr.bf16.mxu0 0
      %548 = vmatpush1.bf16.msra.mxu0 0
      %549 = vmatprep.subr.bf16.mxu0 0
      %550 = vmatpush1.bf16.msra.mxu0 0
      %551 = vmatprep.subr.bf16.mxu0 0
      %552 = vmatpush1.bf16.msra.mxu0 0
      %553 = vmatprep.subr.bf16.mxu0 0
      %554 = vmatpush1.bf16.msra.mxu0 %v537
      %555 = vmatprep.subr.bf16.mxu0 0
      %556 = vmatpush2.bf16.msra.mxu0 0
      %557 = vmatprep.subr.bf16.mxu0 0
      %558 = vmatpush2.bf16.msra.mxu0 0
      %559 = vmatprep.subr.bf16.mxu0 0
      %560 = vmatpush2.bf16.msra.mxu0 0
      %561 = vmatprep.subr.bf16.mxu0 0
      %562 = vmatpush2.bf16.msra.mxu0 0
      %563 = vmatprep.subr.bf16.mxu0 0
      %564 = vmatpush2.bf16.msra.mxu0 0
      %565 = vmatprep.subr.bf16.mxu0 0
      %566 = vmatpush2.bf16.msra.mxu0 0
      %567 = vmatprep.subr.bf16.mxu0 0
      %568 = vmatpush2.bf16.msra.mxu0 0
      %569 = vmatprep.subr.bf16.mxu0 0
      %570 = vmatpush2.bf16.msra.mxu0 0
      %571 = vmatprep.mubr.bf16.mxu0 0
      %572 = vmatmul.mubr.bf16.gmra.mxu0 %v488
      %v573 = vpop.f32.mrf.mxu0
      %v574 = vadd.f32 %v399, %v573
      %v575 = vpop.f32.mrf.mxu0
      %v576 = vpop.f32.mrf.mxu0
      %v577 = vadd.f32 %v399, %v576
      %v578 = vpop.f32.mrf.mxu0
      %579 = vmatprep.mubr.bf16.mxu0 0
      %580 = vmatmul.mubr.bf16.gmra.mxu0 %v491
      %v581 = vpop.f32.mrf.mxu0
      %v582 = vadd.f32 %v399, %v581
      %v583 = vpop.f32.mrf.mxu0
      %v584 = vpop.f32.mrf.mxu0
      %v585 = vadd.f32 %v399, %v584
      %v586 = vpop.f32.mrf.mxu0
      %587 = vmatprep.mubr.bf16.mxu0 0
      %588 = vmatmul.mubr.bf16.gmra.mxu0 %v494
      %v589 = vpop.f32.mrf.mxu0
      %v590 = vadd.f32 %v399, %v589
      %v591 = vpop.f32.mrf.mxu0
      %v592 = vpop.f32.mrf.mxu0
      %v593 = vadd.f32 %v399, %v592
      %v594 = vpop.f32.mrf.mxu0
      %595 = vmatprep.mubr.bf16.mxu0 0
      %596 = vmatmul.mubr.bf16.gmra.mxu0 %v497
      %v597 = vpop.f32.mrf.mxu0
      %v598 = vadd.f32 %v399, %v597
      %v599 = vpop.f32.mrf.mxu0
      %v600 = vpop.f32.mrf.mxu0
      %v601 = vadd.f32 %v399, %v600
      %v602 = vpop.f32.mrf.mxu0
      %603 = vmatprep.mubr.bf16.mxu0 0
      %604 = vmatmul.mubr.bf16.gmra.mxu0 %v500
      %v605 = vpop.f32.mrf.mxu0
      %v606 = vadd.f32 %v399, %v605
      %v607 = vpop.f32.mrf.mxu0
      %v608 = vpop.f32.mrf.mxu0
      %v609 = vadd.f32 %v399, %v608
      %v610 = vpop.f32.mrf.mxu0
      %611 = vmatprep.mubr.bf16.mxu0 0
      %612 = vmatmul.mubr.bf16.gmra.mxu0 %v503
      %v613 = vpop.f32.mrf.mxu0
      %v614 = vadd.f32 %v399, %v613
      %v615 = vpop.f32.mrf.mxu0
      %v616 = vpop.f32.mrf.mxu0
      %v617 = vadd.f32 %v399, %v616
      %v618 = vpop.f32.mrf.mxu0
      %619 = vmatprep.mubr.bf16.mxu0 0
      %620 = vmatmul.mubr.bf16.gmra.mxu0 %v506
      %v621 = vpop.f32.mrf.mxu0
      %v622 = vadd.f32 %v399, %v621
      %v623 = vpop.f32.mrf.mxu0
      %v624 = vpop.f32.mrf.mxu0
      %v625 = vadd.f32 %v399, %v624
      %v626 = vpop.f32.mrf.mxu0
      %627 = vmatprep.mubr.bf16.mxu0 0
      %628 = vmatmul.mubr.bf16.gmra.mxu0 %v509
      %v629 = vpop.f32.mrf.mxu0
      %v630 = vadd.f32 %v399, %v629
      %v631 = vpop.f32.mrf.mxu0
      %v632 = vpop.f32.mrf.mxu0
      %v633 = vadd.f32 %v399, %v632
      %v634 = vpop.f32.mrf.mxu0
      %635 = vmatprep.mubr.bf16.mxu0 0
      %636 = vmatmul.mubr.bf16.gmra.mxu0 %v512
      %v637 = vpop.f32.mrf.mxu0
      %v638 = vadd.f32 %v399, %v637
      %v639 = vpop.f32.mrf.mxu0
      %v640 = vpop.f32.mrf.mxu0
      %v641 = vadd.f32 %v399, %v640
      %v642 = vpop.f32.mrf.mxu0
      %643 = vmatprep.mubr.bf16.mxu0 0
      %644 = vmatmul.mubr.bf16.gmra.mxu0 %v515
      %v645 = vpop.f32.mrf.mxu0
      %v646 = vadd.f32 %v399, %v645
      %v647 = vpop.f32.mrf.mxu0
      %v648 = vpop.f32.mrf.mxu0
      %v649 = vadd.f32 %v399, %v648
      %v650 = vpop.f32.mrf.mxu0
      %651 = vmatprep.mubr.bf16.mxu0 0
      %652 = vmatmul.mubr.bf16.gmra.mxu0 %v518
      %v653 = vpop.f32.mrf.mxu0
      %v654 = vadd.f32 %v399, %v653
      %v655 = vpop.f32.mrf.mxu0
      %v656 = vpop.f32.mrf.mxu0
      %v657 = vadd.f32 %v399, %v656
      %v658 = vpop.f32.mrf.mxu0
      %659 = vmatprep.mubr.bf16.mxu0 0
      %660 = vmatmul.mubr.bf16.gmra.mxu0 %v521
      %v661 = vpop.f32.mrf.mxu0
      %v662 = vadd.f32 %v399, %v661
      %v663 = vpop.f32.mrf.mxu0
      %v664 = vpop.f32.mrf.mxu0
      %v665 = vadd.f32 %v399, %v664
      %v666 = vpop.f32.mrf.mxu0
      %667 = vmatprep.mubr.bf16.mxu0 0
      %668 = vmatmul.mubr.bf16.gmra.mxu0 %v524
      %v669 = vpop.f32.mrf.mxu0
      %v670 = vadd.f32 %v399, %v669
      %v671 = vpop.f32.mrf.mxu0
      %v672 = vpop.f32.mrf.mxu0
      %v673 = vadd.f32 %v399, %v672
      %v674 = vpop.f32.mrf.mxu0
      %675 = vmatprep.mubr.bf16.mxu0 0
      %676 = vmatmul.mubr.bf16.gmra.mxu0 %v527
      %v677 = vpop.f32.mrf.mxu0
      %v678 = vadd.f32 %v399, %v677
      %v679 = vpop.f32.mrf.mxu0
      %v680 = vpop.f32.mrf.mxu0
      %v681 = vadd.f32 %v399, %v680
      %v682 = vpop.f32.mrf.mxu0
      %683 = vmatprep.mubr.bf16.mxu0 0
      %684 = vmatmul.mubr.bf16.gmra.mxu0 %v530
      %v685 = vpop.f32.mrf.mxu0
      %v686 = vadd.f32 %v399, %v685
      %v687 = vpop.f32.mrf.mxu0
      %v688 = vpop.f32.mrf.mxu0
      %v689 = vadd.f32 %v399, %v688
      %v690 = vpop.f32.mrf.mxu0
      %691 = vmatprep.mubr.bf16.mxu0 0
      %692 = vmatmul.mubr.bf16.gmra.mxu0 %v533
      %v693 = vpop.f32.mrf.mxu0
      %v694 = vadd.f32 %v399, %v693
      %v695 = vpop.f32.mrf.mxu0
      %v696 = vpop.f32.mrf.mxu0
      %v697 = vadd.f32 %v399, %v696
      %v698 = vpop.f32.mrf.mxu0
      %699 = vdwg.mxu0
      %v700 = vmax.f32 %v574, 0.0
      %v701 = vmax.f32 %v577, 0.0
      %v702 = vmax.f32 %v582, 0.0
      %v703 = vmax.f32 %v585, 0.0
      %v704 = vmax.f32 %v590, 0.0
      %v705 = vmax.f32 %v593, 0.0
      %v706 = vmax.f32 %v598, 0.0
      %v707 = vmax.f32 %v601, 0.0
      %v708 = vmax.f32 %v606, 0.0
      %v709 = vmax.f32 %v609, 0.0
      %v710 = vmax.f32 %v614, 0.0
      %v711 = vmax.f32 %v617, 0.0
      %v712 = vmax.f32 %v622, 0.0
      %v713 = vmax.f32 %v625, 0.0
      %v714 = vmax.f32 %v630, 0.0
      %v715 = vmax.f32 %v633, 0.0
      %v716 = vmax.f32 %v638, 0.0
      %v717 = vmax.f32 %v641, 0.0
      %v718 = vmax.f32 %v646, 0.0
      %v719 = vmax.f32 %v649, 0.0
      %v720 = vmax.f32 %v654, 0.0
      %v721 = vmax.f32 %v657, 0.0
      %v722 = vmax.f32 %v662, 0.0
      %v723 = vmax.f32 %v665, 0.0
      %v724 = vmax.f32 %v670, 0.0
      %v725 = vmax.f32 %v673, 0.0
      %v726 = vmax.f32 %v678, 0.0
      %v727 = vmax.f32 %v681, 0.0
      %v728 = vmax.f32 %v686, 0.0
      %v729 = vmax.f32 %v689, 0.0
      %v730 = vmax.f32 %v694, 0.0
      %v731 = vmax.f32 %v697, 0.0
      %v732 = vpack.c.bf16 %v701, %v700
      %v733 = vpack.c.bf16 %v703, %v702
      %v734 = vpack.c.bf16 %v705, %v704
      %v735 = vpack.c.bf16 %v707, %v706
      %v736 = vpack.c.bf16 %v709, %v708
      %v737 = vpack.c.bf16 %v711, %v710
      %v738 = vpack.c.bf16 %v713, %v712
      %v739 = vpack.c.bf16 %v715, %v714
      %v740 = vpack.c.bf16 %v717, %v716
      %v741 = vpack.c.bf16 %v719, %v718
      %v742 = vpack.c.bf16 %v721, %v720
      %v743 = vpack.c.bf16 %v723, %v722
      %v744 = vpack.c.bf16 %v725, %v724
      %v745 = vpack.c.bf16 %v727, %v726
      %v746 = vpack.c.bf16 %v729, %v728
      %v747 = vpack.c.bf16 %v731, %v730
      %v748 = vld [vmem:[%s5] sm:$0xf]
      %v749 = vld [vmem:[%s5 + $0x4] sm:$0xf]
      %v750 = vld [vmem:[%s5 + $0x8] sm:$0xf]
      %v751 = vld [vmem:[%s5 + $0xc] sm:$0xf]
      %v752 = vld [vmem:[%s5 + $0x10] sm:$0xf]
      %v753 = vld [vmem:[%s5 + $0x14] sm:$0xf]
      %v754 = vld [vmem:[%s5 + $0x18] sm:$0xf]
      %v755 = vld [vmem:[%s5 + $0x1c] sm:$0xf]
      %v756 = vld [vmem:[%s5 + $0x20] sm:$0xf]
      %v757 = vld [vmem:[%s5 + $0x24] sm:$0xf]
      %v758 = vld [vmem:[%s5 + $0x28] sm:$0xf]
      %v759 = vld [vmem:[%s5 + $0x2c] sm:$0xf]
      %v760 = vld [vmem:[%s5 + $0x30] sm:$0xf]
      %v761 = vld [vmem:[%s5 + $0x34] sm:$0xf]
      %v762 = vld [vmem:[%s5 + $0x38] sm:$0xf]
      %v763 = vld [vmem:[%s5 + $0x3c] sm:$0xf]
      %v764 = vld [vmem:[%s6] sm:$0x1]
      %v766 = vlaneseq
      %v767 = vshrl.u32 %v766, 7
      %v768 = vsub.s32 0, %v767
      %v769 = vrot.slane %v764, %v768
      %v787 = vunpack.c.l.b16 %v748
      %v788 = vunpack.c.l.b16 %v749
      %v789 = vunpack.c.l.b16 %v750
      %v790 = vunpack.c.l.b16 %v751
      %v791 = vunpack.c.l.b16 %v752
      %v792 = vunpack.c.l.b16 %v753
      %v793 = vunpack.c.l.b16 %v754
      %v794 = vunpack.c.l.b16 %v755
      %v795 = vunpack.c.l.b16 %v756
      %v796 = vunpack.c.l.b16 %v757
      %v797 = vunpack.c.l.b16 %v758
      %v798 = vunpack.c.l.b16 %v759
      %v799 = vunpack.c.l.b16 %v760
      %v800 = vunpack.c.l.b16 %v761
      %v801 = vunpack.c.l.b16 %v762
      %v802 = vunpack.c.l.b16 %v763
      %v803 = vpack.c.b16 %v788, %v787
      %v804 = vpack.c.b16 %v790, %v789
      %v805 = vpack.c.b16 %v792, %v791
      %v806 = vpack.c.b16 %v794, %v793
      %v807 = vpack.c.b16 %v796, %v795
      %v808 = vpack.c.b16 %v798, %v797
      %v809 = vpack.c.b16 %v800, %v799
      %v810 = vpack.c.b16 %v802, %v801
      %819 = vmatprep.subr.bf16.mxu0 0
      %820 = vmatpush1.bf16.msra.mxu0 %v810
      %821 = vmatprep.subr.bf16.mxu0 0
      %822 = vmatpush1.bf16.msra.mxu0 %v809
      %823 = vmatprep.subr.bf16.mxu0 0
      %824 = vmatpush1.bf16.msra.mxu0 %v808
      %825 = vmatprep.subr.bf16.mxu0 0
      %826 = vmatpush1.bf16.msra.mxu0 %v807
      %827 = vmatprep.subr.bf16.mxu0 0
      %828 = vmatpush1.bf16.msra.mxu0 %v806
      %829 = vmatprep.subr.bf16.mxu0 0
      %830 = vmatpush1.bf16.msra.mxu0 %v805
      %831 = vmatprep.subr.bf16.mxu0 0
      %832 = vmatpush1.bf16.msra.mxu0 %v804
      %833 = vmatprep.subr.bf16.mxu0 0
      %834 = vmatpush1.bf16.msra.mxu0 %v803
      %835 = vmatprep.subr.bf16.mxu0 0
      %836 = vmatpush2.bf16.msra.mxu0 0
      %837 = vmatprep.subr.bf16.mxu0 0
      %838 = vmatpush2.bf16.msra.mxu0 0
      %839 = vmatprep.subr.bf16.mxu0 0
      %840 = vmatpush2.bf16.msra.mxu0 0
      %841 = vmatprep.subr.bf16.mxu0 0
      %842 = vmatpush2.bf16.msra.mxu0 0
      %843 = vmatprep.subr.bf16.mxu0 0
      %844 = vmatpush2.bf16.msra.mxu0 0
      %845 = vmatprep.subr.bf16.mxu0 0
      %846 = vmatpush2.bf16.msra.mxu0 0
      %847 = vmatprep.subr.bf16.mxu0 0
      %848 = vmatpush2.bf16.msra.mxu0 0
      %849 = vmatprep.subr.bf16.mxu0 0
      %850 = vmatpush2.bf16.msra.mxu0 0
      %851 = vmatprep.mubr.bf16.mxu0 0
      %852 = vmatmul.mubr.bf16.gmra.mxu0 %v732
      %v853 = vpop.f32.mrf.mxu0
      %v854 = vadd.f32 %v769, %v853
      %v855 = vpop.f32.mrf.mxu0
      %v856 = vpop.f32.mrf.mxu0
      %v857 = vadd.f32 %v769, %v856
      %v858 = vpop.f32.mrf.mxu0
      %859 = vmatprep.mubr.bf16.mxu0 0
      %860 = vmatmul.mubr.bf16.gmra.mxu0 %v733
      %v861 = vpop.f32.mrf.mxu0
      %v862 = vadd.f32 %v769, %v861
      %v863 = vpop.f32.mrf.mxu0
      %v864 = vpop.f32.mrf.mxu0
      %v865 = vadd.f32 %v769, %v864
      %v866 = vpop.f32.mrf.mxu0
      %867 = vmatprep.mubr.bf16.mxu0 0
      %868 = vmatmul.mubr.bf16.gmra.mxu0 %v734
      %v869 = vpop.f32.mrf.mxu0
      %v870 = vadd.f32 %v769, %v869
      %v871 = vpop.f32.mrf.mxu0
      %v872 = vpop.f32.mrf.mxu0
      %v873 = vadd.f32 %v769, %v872
      %v874 = vpop.f32.mrf.mxu0
      %875 = vmatprep.mubr.bf16.mxu0 0
      %876 = vmatmul.mubr.bf16.gmra.mxu0 %v735
      %v877 = vpop.f32.mrf.mxu0
      %v878 = vadd.f32 %v769, %v877
      %v879 = vpop.f32.mrf.mxu0
      %v880 = vpop.f32.mrf.mxu0
      %v881 = vadd.f32 %v769, %v880
      %v882 = vpop.f32.mrf.mxu0
      %883 = vmatprep.mubr.bf16.mxu0 0
      %884 = vmatmul.mubr.bf16.gmra.mxu0 %v736
      %v885 = vpop.f32.mrf.mxu0
      %v886 = vadd.f32 %v769, %v885
      %v887 = vpop.f32.mrf.mxu0
      %v888 = vpop.f32.mrf.mxu0
      %v889 = vadd.f32 %v769, %v888
      %v890 = vpop.f32.mrf.mxu0
      %891 = vmatprep.mubr.bf16.mxu0 0
      %892 = vmatmul.mubr.bf16.gmra.mxu0 %v737
      %v893 = vpop.f32.mrf.mxu0
      %v894 = vadd.f32 %v769, %v893
      %v895 = vpop.f32.mrf.mxu0
      %v896 = vpop.f32.mrf.mxu0
      %v897 = vadd.f32 %v769, %v896
      %v898 = vpop.f32.mrf.mxu0
      %899 = vmatprep.mubr.bf16.mxu0 0
      %900 = vmatmul.mubr.bf16.gmra.mxu0 %v738
      %v901 = vpop.f32.mrf.mxu0
      %v902 = vadd.f32 %v769, %v901
      %v903 = vpop.f32.mrf.mxu0
      %v904 = vpop.f32.mrf.mxu0
      %v905 = vadd.f32 %v769, %v904
      %v906 = vpop.f32.mrf.mxu0
      %907 = vmatprep.mubr.bf16.mxu0 0
      %908 = vmatmul.mubr.bf16.gmra.mxu0 %v739
      %v909 = vpop.f32.mrf.mxu0
      %v910 = vadd.f32 %v769, %v909
      %v911 = vpop.f32.mrf.mxu0
      %v912 = vpop.f32.mrf.mxu0
      %v913 = vadd.f32 %v769, %v912
      %v914 = vpop.f32.mrf.mxu0
      %915 = vmatprep.mubr.bf16.mxu0 0
      %916 = vmatmul.mubr.bf16.gmra.mxu0 %v740
      %v917 = vpop.f32.mrf.mxu0
      %v918 = vadd.f32 %v769, %v917
      %v919 = vpop.f32.mrf.mxu0
      %v920 = vpop.f32.mrf.mxu0
      %v921 = vadd.f32 %v769, %v920
      %v922 = vpop.f32.mrf.mxu0
      %923 = vmatprep.mubr.bf16.mxu0 0
      %924 = vmatmul.mubr.bf16.gmra.mxu0 %v741
      %v925 = vpop.f32.mrf.mxu0
      %v926 = vadd.f32 %v769, %v925
      %v927 = vpop.f32.mrf.mxu0
      %v928 = vpop.f32.mrf.mxu0
      %v929 = vadd.f32 %v769, %v928
      %v930 = vpop.f32.mrf.mxu0
      %931 = vmatprep.mubr.bf16.mxu0 0
      %932 = vmatmul.mubr.bf16.gmra.mxu0 %v742
      %v933 = vpop.f32.mrf.mxu0
      %v934 = vadd.f32 %v769, %v933
      %v935 = vpop.f32.mrf.mxu0
      %v936 = vpop.f32.mrf.mxu0
      %v937 = vadd.f32 %v769, %v936
      %v938 = vpop.f32.mrf.mxu0
      %939 = vmatprep.mubr.bf16.mxu0 0
      %940 = vmatmul.mubr.bf16.gmra.mxu0 %v743
      %v941 = vpop.f32.mrf.mxu0
      %v942 = vadd.f32 %v769, %v941
      %v943 = vpop.f32.mrf.mxu0
      %v944 = vpop.f32.mrf.mxu0
      %v945 = vadd.f32 %v769, %v944
      %v946 = vpop.f32.mrf.mxu0
      %947 = vmatprep.mubr.bf16.mxu0 0
      %948 = vmatmul.mubr.bf16.gmra.mxu0 %v744
      %v949 = vpop.f32.mrf.mxu0
      %v950 = vadd.f32 %v769, %v949
      %v951 = vpop.f32.mrf.mxu0
      %v952 = vpop.f32.mrf.mxu0
      %v953 = vadd.f32 %v769, %v952
      %v954 = vpop.f32.mrf.mxu0
      %955 = vmatprep.mubr.bf16.mxu0 0
      %956 = vmatmul.mubr.bf16.gmra.mxu0 %v745
      %v957 = vpop.f32.mrf.mxu0
      %v958 = vadd.f32 %v769, %v957
      %v959 = vpop.f32.mrf.mxu0
      %v960 = vpop.f32.mrf.mxu0
      %v961 = vadd.f32 %v769, %v960
      %v962 = vpop.f32.mrf.mxu0
      %963 = vmatprep.mubr.bf16.mxu0 0
      %964 = vmatmul.mubr.bf16.gmra.mxu0 %v746
      %v965 = vpop.f32.mrf.mxu0
      %v966 = vadd.f32 %v769, %v965
      %v967 = vpop.f32.mrf.mxu0
      %v968 = vpop.f32.mrf.mxu0
      %v969 = vadd.f32 %v769, %v968
      %v970 = vpop.f32.mrf.mxu0
      %971 = vmatprep.mubr.bf16.mxu0 0
      %972 = vmatmul.mubr.bf16.gmra.mxu0 %v747
      %v973 = vpop.f32.mrf.mxu0
      %v974 = vadd.f32 %v769, %v973
      %v975 = vpop.f32.mrf.mxu0
      %v976 = vpop.f32.mrf.mxu0
      %v977 = vadd.f32 %v769, %v976
      %v978 = vpop.f32.mrf.mxu0
      %979 = vdwg.mxu0
      %v980 = vld [vmem:[%s340] sm:$0xff]
      %v981 = vld [vmem:[%s340 + $0x8] sm:$0xff]
      %v982 = vld [vmem:[%s340 + $0x10] sm:$0xff]
      %v983 = vld [vmem:[%s340 + $0x18] sm:$0xff]
      %v984 = vld [vmem:[%s340 + $0x20] sm:$0xff]
      %v985 = vld [vmem:[%s340 + $0x28] sm:$0xff]
      %v986 = vld [vmem:[%s340 + $0x30] sm:$0xff]
      %v987 = vld [vmem:[%s340 + $0x38] sm:$0xff]
      %v988 = vld [vmem:[%s340 + $0x40] sm:$0xff]
      %v989 = vld [vmem:[%s340 + $0x48] sm:$0xff]
      %v990 = vld [vmem:[%s340 + $0x50] sm:$0xff]
      %v991 = vld [vmem:[%s340 + $0x58] sm:$0xff]
      %v992 = vld [vmem:[%s340 + $0x60] sm:$0xff]
      %v993 = vld [vmem:[%s340 + $0x68] sm:$0xff]
      %v994 = vld [vmem:[%s340 + $0x70] sm:$0xff]
      %v995 = vld [vmem:[%s340 + $0x78] sm:$0xff]
      %v996 = vld [vmem:[%s340 + $0x80] sm:$0xff]
      %v997 = vld [vmem:[%s340 + $0x88] sm:$0xff]
      %v998 = vld [vmem:[%s340 + $0x90] sm:$0xff]
      %v999 = vld [vmem:[%s340 + $0x98] sm:$0xff]
      %v1000 = vld [vmem:[%s340 + $0xa0] sm:$0xff]
      %v1001 = vld [vmem:[%s340 + $0xa8] sm:$0xff]
      %v1002 = vld [vmem:[%s340 + $0xb0] sm:$0xff]
      %v1003 = vld [vmem:[%s340 + $0xb8] sm:$0xff]
      %v1004 = vld [vmem:[%s340 + $0xc0] sm:$0xff]
      %v1005 = vld [vmem:[%s340 + $0xc8] sm:$0xff]
      %v1006 = vld [vmem:[%s340 + $0xd0] sm:$0xff]
      %v1007 = vld [vmem:[%s340 + $0xd8] sm:$0xff]
      %v1008 = vld [vmem:[%s340 + $0xe0] sm:$0xff]
      %v1009 = vld [vmem:[%s340 + $0xe8] sm:$0xff]
      %v1010 = vld [vmem:[%s340 + $0xf0] sm:$0xff]
      %v1011 = vld [vmem:[%s340 + $0xf8] sm:$0xff]
      %v1012 = vmul.f32 %v854, 1.442695
      %v1013 = vpow.pop %v1012
      %v1014 = vmul.f32 %v857, 1.442695
      %v1015 = vpow.pop %v1014
      %v1016 = vmul.f32 %v862, 1.442695
      %v1017 = vpow.pop %v1016
      %v1018 = vmul.f32 %v865, 1.442695
      %v1019 = vpow.pop %v1018
      %v1020 = vmul.f32 %v870, 1.442695
      %v1021 = vpow.pop %v1020
      %v1022 = vmul.f32 %v873, 1.442695
      %v1023 = vpow.pop %v1022
      %v1024 = vmul.f32 %v878, 1.442695
      %v1025 = vpow.pop %v1024
      %v1026 = vmul.f32 %v881, 1.442695
      %v1027 = vpow.pop %v1026
      %v1028 = vmul.f32 %v886, 1.442695
      %v1029 = vpow.pop %v1028
      %v1030 = vmul.f32 %v889, 1.442695
      %v1031 = vpow.pop %v1030
      %v1032 = vmul.f32 %v894, 1.442695
      %v1033 = vpow.pop %v1032
      %v1034 = vmul.f32 %v897, 1.442695
      %v1035 = vpow.pop %v1034
      %v1036 = vmul.f32 %v902, 1.442695
      %v1037 = vpow.pop %v1036
      %v1038 = vmul.f32 %v905, 1.442695
      %v1039 = vpow.pop %v1038
      %v1040 = vmul.f32 %v910, 1.442695
      %v1041 = vpow.pop %v1040
      %v1042 = vmul.f32 %v913, 1.442695
      %v1043 = vpow.pop %v1042
      %v1044 = vmul.f32 %v918, 1.442695
      %v1045 = vpow.pop %v1044
      %v1046 = vmul.f32 %v921, 1.442695
      %v1047 = vpow.pop %v1046
      %v1048 = vmul.f32 %v926, 1.442695
      %v1049 = vpow.pop %v1048
      %v1050 = vmul.f32 %v929, 1.442695
      %v1051 = vpow.pop %v1050
      %v1052 = vmul.f32 %v934, 1.442695
      %v1053 = vpow.pop %v1052
      %v1054 = vmul.f32 %v937, 1.442695
      %v1055 = vpow.pop %v1054
      %v1056 = vmul.f32 %v942, 1.442695
      %v1057 = vpow.pop %v1056
      %v1058 = vmul.f32 %v945, 1.442695
      %v1059 = vpow.pop %v1058
      %v1060 = vmul.f32 %v950, 1.442695
      %v1061 = vpow.pop %v1060
      %v1062 = vmul.f32 %v953, 1.442695
      %v1063 = vpow.pop %v1062
      %v1064 = vmul.f32 %v958, 1.442695
      %v1065 = vpow.pop %v1064
      %v1066 = vmul.f32 %v961, 1.442695
      %v1067 = vpow.pop %v1066
      %v1068 = vmul.f32 %v966, 1.442695
      %v1069 = vpow.pop %v1068
      %v1070 = vmul.f32 %v969, 1.442695
      %v1071 = vpow.pop %v1070
      %v1072 = vmul.f32 %v974, 1.442695
      %v1073 = vpow.pop %v1072
      %v1074 = vmul.f32 %v977, 1.442695
      %v1075 = vpow.pop %v1074
      %v1076 = vmul.f32 %v980, %v1013
      %v1077 = vmul.f32 %v981, %v1015
      %v1078 = vmul.f32 %v982, %v1017
      %v1079 = vmul.f32 %v983, %v1019
      %v1080 = vmul.f32 %v984, %v1021
      %v1081 = vmul.f32 %v985, %v1023
      %v1082 = vmul.f32 %v986, %v1025
      %v1083 = vmul.f32 %v987, %v1027
      %v1084 = vmul.f32 %v988, %v1029
      %v1085 = vmul.f32 %v989, %v1031
      %v1086 = vmul.f32 %v990, %v1033
      %v1087 = vmul.f32 %v991, %v1035
      %v1088 = vmul.f32 %v992, %v1037
      %v1089 = vmul.f32 %v993, %v1039
      %v1090 = vmul.f32 %v994, %v1041
      %v1091 = vmul.f32 %v995, %v1043
      %v1092 = vmul.f32 %v996, %v1045
      %v1093 = vmul.f32 %v997, %v1047
      %v1094 = vmul.f32 %v998, %v1049
      %v1095 = vmul.f32 %v999, %v1051
      %v1096 = vmul.f32 %v1000, %v1053
      %v1097 = vmul.f32 %v1001, %v1055
      %v1098 = vmul.f32 %v1002, %v1057
      %v1099 = vmul.f32 %v1003, %v1059
      %v1100 = vmul.f32 %v1004, %v1061
      %v1101 = vmul.f32 %v1005, %v1063
      %v1102 = vmul.f32 %v1006, %v1065
      %v1103 = vmul.f32 %v1007, %v1067
      %v1104 = vmul.f32 %v1008, %v1069
      %v1105 = vmul.f32 %v1009, %v1071
      %v1106 = vmul.f32 %v1010, %v1073
      %v1107 = vmul.f32 %v1011, %v1075
      %1140 = vrot.lane.b32.xlu0 %v854, 124
      %v1141 = vpop.permute.xlu0 %1140
      %1142 = vrot.lane.b32.xlu0 %v857, 124
      %v1143 = vpop.permute.xlu0 %1142
      %1144 = vrot.lane.b32.xlu0 %v862, 124
      %v1145 = vpop.permute.xlu0 %1144
      %1146 = vrot.lane.b32.xlu0 %v865, 124
      %v1147 = vpop.permute.xlu0 %1146
      %1148 = vrot.lane.b32.xlu0 %v870, 124
      %v1149 = vpop.permute.xlu0 %1148
      %1150 = vrot.lane.b32.xlu0 %v873, 124
      %v1151 = vpop.permute.xlu0 %1150
      %1152 = vrot.lane.b32.xlu0 %v878, 124
      %v1153 = vpop.permute.xlu0 %1152
      %1154 = vrot.lane.b32.xlu0 %v881, 124
      %v1155 = vpop.permute.xlu0 %1154
      %1156 = vrot.lane.b32.xlu0 %v886, 124
      %v1157 = vpop.permute.xlu0 %1156
      %1158 = vrot.lane.b32.xlu0 %v889, 124
      %v1159 = vpop.permute.xlu0 %1158
      %1160 = vrot.lane.b32.xlu0 %v894, 124
      %v1161 = vpop.permute.xlu0 %1160
      %1162 = vrot.lane.b32.xlu0 %v897, 124
      %v1163 = vpop.permute.xlu0 %1162
      %1164 = vrot.lane.b32.xlu0 %v902, 124
      %v1165 = vpop.permute.xlu0 %1164
      %1166 = vrot.lane.b32.xlu0 %v905, 124
      %v1167 = vpop.permute.xlu0 %1166
      %1168 = vrot.lane.b32.xlu0 %v910, 124
      %v1169 = vpop.permute.xlu0 %1168
      %1170 = vrot.lane.b32.xlu0 %v913, 124
      %v1171 = vpop.permute.xlu0 %1170
      %1172 = vrot.lane.b32.xlu0 %v918, 124
      %v1173 = vpop.permute.xlu0 %1172
      %1174 = vrot.lane.b32.xlu0 %v921, 124
      %v1175 = vpop.permute.xlu0 %1174
      %1176 = vrot.lane.b32.xlu0 %v926, 124
      %v1177 = vpop.permute.xlu0 %1176
      %1178 = vrot.lane.b32.xlu0 %v929, 124
      %v1179 = vpop.permute.xlu0 %1178
      %1180 = vrot.lane.b32.xlu0 %v934, 124
      %v1181 = vpop.permute.xlu0 %1180
      %1182 = vrot.lane.b32.xlu0 %v937, 124
      %v1183 = vpop.permute.xlu0 %1182
      %1184 = vrot.lane.b32.xlu0 %v942, 124
      %v1185 = vpop.permute.xlu0 %1184
      %1186 = vrot.lane.b32.xlu0 %v945, 124
      %v1187 = vpop.permute.xlu0 %1186
      %1188 = vrot.lane.b32.xlu0 %v950, 124
      %v1189 = vpop.permute.xlu0 %1188
      %1190 = vrot.lane.b32.xlu0 %v953, 124
      %v1191 = vpop.permute.xlu0 %1190
      %1192 = vrot.lane.b32.xlu0 %v958, 124
      %v1193 = vpop.permute.xlu0 %1192
      %1194 = vrot.lane.b32.xlu0 %v961, 124
      %v1195 = vpop.permute.xlu0 %1194
      %1196 = vrot.lane.b32.xlu0 %v966, 124
      %v1197 = vpop.permute.xlu0 %1196
      %1198 = vrot.lane.b32.xlu0 %v969, 124
      %v1199 = vpop.permute.xlu0 %1198
      %1200 = vrot.lane.b32.xlu0 %v974, 124
      %v1201 = vpop.permute.xlu0 %1200
      %1202 = vrot.lane.b32.xlu0 %v977, 124
      %v1203 = vpop.permute.xlu0 %1202
      %v1236 = vadd.f32 %v1076, %v1141
      %v1237 = vadd.f32 %v1077, %v1143
      %v1238 = vadd.f32 %v1078, %v1145
      %v1239 = vadd.f32 %v1079, %v1147
      %v1240 = vadd.f32 %v1080, %v1149
      %v1241 = vadd.f32 %v1081, %v1151
      %v1242 = vadd.f32 %v1082, %v1153
      %v1243 = vadd.f32 %v1083, %v1155
      %v1244 = vadd.f32 %v1084, %v1157
      %v1245 = vadd.f32 %v1085, %v1159
      %v1246 = vadd.f32 %v1086, %v1161
      %v1247 = vadd.f32 %v1087, %v1163
      %v1248 = vadd.f32 %v1088, %v1165
      %v1249 = vadd.f32 %v1089, %v1167
      %v1250 = vadd.f32 %v1090, %v1169
      %v1251 = vadd.f32 %v1091, %v1171
      %v1252 = vadd.f32 %v1092, %v1173
      %v1253 = vadd.f32 %v1093, %v1175
      %v1254 = vadd.f32 %v1094, %v1177
      %v1255 = vadd.f32 %v1095, %v1179
      %v1256 = vadd.f32 %v1096, %v1181
      %v1257 = vadd.f32 %v1097, %v1183
      %v1258 = vadd.f32 %v1098, %v1185
      %v1259 = vadd.f32 %v1099, %v1187
      %v1260 = vadd.f32 %v1100, %v1189
      %v1261 = vadd.f32 %v1101, %v1191
      %v1262 = vadd.f32 %v1102, %v1193
      %v1263 = vadd.f32 %v1103, %v1195
      %v1264 = vadd.f32 %v1104, %v1197
      %v1265 = vadd.f32 %v1105, %v1199
      %v1266 = vadd.f32 %v1106, %v1201
      %v1267 = vadd.f32 %v1107, %v1203
      %vm1268 = vcmask 31744
      %1269 = vst.msk [vmem:[%s346] sm:$0xff] %vm1268, %v1236
      %1270 = vst.msk [vmem:[%s346 + $0x8] sm:$0xff] %vm1268, %v1237
      %1271 = vst.msk [vmem:[%s346 + $0x10] sm:$0xff] %vm1268, %v1238
      %1272 = vst.msk [vmem:[%s346 + $0x18] sm:$0xff] %vm1268, %v1239
      %1273 = vst.msk [vmem:[%s346 + $0x20] sm:$0xff] %vm1268, %v1240
      %1274 = vst.msk [vmem:[%s346 + $0x28] sm:$0xff] %vm1268, %v1241
      %1275 = vst.msk [vmem:[%s346 + $0x30] sm:$0xff] %vm1268, %v1242
      %1276 = vst.msk [vmem:[%s346 + $0x38] sm:$0xff] %vm1268, %v1243
      %1277 = vst.msk [vmem:[%s346 + $0x40] sm:$0xff] %vm1268, %v1244
      %1278 = vst.msk [vmem:[%s346 + $0x48] sm:$0xff] %vm1268, %v1245
      %1279 = vst.msk [vmem:[%s346 + $0x50] sm:$0xff] %vm1268, %v1246
      %1280 = vst.msk [vmem:[%s346 + $0x58] sm:$0xff] %vm1268, %v1247
      %1281 = vst.msk [vmem:[%s346 + $0x60] sm:$0xff] %vm1268, %v1248
      %1282 = vst.msk [vmem:[%s346 + $0x68] sm:$0xff] %vm1268, %v1249
      %1283 = vst.msk [vmem:[%s346 + $0x70] sm:$0xff] %vm1268, %v1250
      %1284 = vst.msk [vmem:[%s346 + $0x78] sm:$0xff] %vm1268, %v1251
      %1285 = vst.msk [vmem:[%s346 + $0x80] sm:$0xff] %vm1268, %v1252
      %1286 = vst.msk [vmem:[%s346 + $0x88] sm:$0xff] %vm1268, %v1253
      %1287 = vst.msk [vmem:[%s346 + $0x90] sm:$0xff] %vm1268, %v1254
      %1288 = vst.msk [vmem:[%s346 + $0x98] sm:$0xff] %vm1268, %v1255
      %1289 = vst.msk [vmem:[%s346 + $0xa0] sm:$0xff] %vm1268, %v1256
      %1290 = vst.msk [vmem:[%s346 + $0xa8] sm:$0xff] %vm1268, %v1257
      %1291 = vst.msk [vmem:[%s346 + $0xb0] sm:$0xff] %vm1268, %v1258
      %1292 = vst.msk [vmem:[%s346 + $0xb8] sm:$0xff] %vm1268, %v1259
      %1293 = vst.msk [vmem:[%s346 + $0xc0] sm:$0xff] %vm1268, %v1260
      %1294 = vst.msk [vmem:[%s346 + $0xc8] sm:$0xff] %vm1268, %v1261
      %1295 = vst.msk [vmem:[%s346 + $0xd0] sm:$0xff] %vm1268, %v1262
      %1296 = vst.msk [vmem:[%s346 + $0xd8] sm:$0xff] %vm1268, %v1263
      %1297 = vst.msk [vmem:[%s346 + $0xe0] sm:$0xff] %vm1268, %v1264
      %1298 = vst.msk [vmem:[%s346 + $0xe8] sm:$0xff] %vm1268, %v1265
      %1299 = vst.msk [vmem:[%s346 + $0xf0] sm:$0xff] %vm1268, %v1266
      %1300 = vst.msk [vmem:[%s346 + $0xf8] sm:$0xff] %vm1268, %v1267
      %s1301 = smul.u32 %s20, 256
      %v1302 = vlaneseq
      %v1303 = vshrl.u32 %v1302, 7
      %v1304 = vadd.s32 %v1303, 8
      %v1305 = vadd.s32 %v1303, 16
      %v1306 = vadd.s32 %v1303, 24
      %v1307 = vadd.s32 %v1303, 32
      %v1308 = vadd.s32 %v1303, 40
      %v1309 = vlaneseq
      %v1310 = vand.u32 %v1309, 127
      %v1311 = vadd.s32 %v1310, 128
      %v1312 = vstv %s1301
      %v1313 = vadd.s32 %v1310, %v1312
      %v1314 = vadd.s32 %v1311, %v1312
      %vm1315 = vcmp.lt.s32.totalorder %v1313, 320
      %vm1316 = vcmp.lt.s32.totalorder %v1314, 320
      %v1317 = vld [vmem:[%s328] sm:$0x3]
      %v1318 = vlaneseq
      %v1319 = vshrl.u32 %v1318, 7
      %v1320 = vsub.s32 0, %v1319
      %v1321 = vrot.slane %v1317, %v1320
      %v1322 = vlaneseq
      %v1323 = vshrl.u32 %v1322, 7
      %v1324 = vsub.s32 1, %v1323
      %v1325 = vrot.slane %v1317, %v1324
      %vm1326 = vcmp.eq.s32.totalorder %v1303, %v1321
      %vm1327 = vcmp.eq.s32.totalorder %v1303, %v1325
      %vm1328 = vcmp.eq.s32.totalorder %v1304, %v1321
      %vm1329 = vcmp.eq.s32.totalorder %v1304, %v1325
      %vm1330 = vcmp.eq.s32.totalorder %v1305, %v1321
      %vm1331 = vcmp.eq.s32.totalorder %v1305, %v1325
      %vm1332 = vcmp.eq.s32.totalorder %v1306, %v1321
      %vm1333 = vcmp.eq.s32.totalorder %v1306, %v1325
      %vm1334 = vcmp.eq.s32.totalorder %v1307, %v1321
      %vm1335 = vcmp.eq.s32.totalorder %v1307, %v1325
      %vm1336 = vcmp.eq.s32.totalorder %v1308, %v1321
      %vm1337 = vcmp.eq.s32.totalorder %v1308, %v1325
      %v1338 = vsel %vm1315, 1, 0
      %v1339 = vsel %vm1316, 1, 0
      %vm1340 = vcmp.eq.s32.totalorder %v1338, 1
      %vm1341 = vcmp.eq.s32.totalorder %v1339, 1
      %vm1342 = vmand %vm1326, %vm1340
      %vm1343 = vmand %vm1327, %vm1341
      %vm1344 = vmand %vm1328, %vm1340
      %vm1345 = vmand %vm1329, %vm1341
      %vm1346 = vmand %vm1330, %vm1340
      %vm1347 = vmand %vm1331, %vm1341
      %vm1348 = vmand %vm1332, %vm1340
      %vm1349 = vmand %vm1333, %vm1341
      %vm1350 = vmand %vm1334, %vm1340
      %vm1351 = vmand %vm1335, %vm1341
      %vm1352 = vmand %vm1336, %vm1340
      %vm1353 = vmand %vm1337, %vm1341
      %v1354 = vsel %vm1342, 1.0, 0.0
      %v1355 = vsel %vm1343, 1.0, 0.0
      %v1356 = vsel %vm1344, 1.0, 0.0
      %v1357 = vsel %vm1345, 1.0, 0.0
      %v1358 = vsel %vm1346, 1.0, 0.0
      %v1359 = vsel %vm1347, 1.0, 0.0
      %v1360 = vsel %vm1348, 1.0, 0.0
      %v1361 = vsel %vm1349, 1.0, 0.0
      %v1362 = vsel %vm1350, 1.0, 0.0
      %v1363 = vsel %vm1351, 1.0, 0.0
      %v1364 = vsel %vm1352, 1.0, 0.0
      %v1365 = vsel %vm1353, 1.0, 0.0
      %v1366 = vpack.c.bf16 %v1356, %v1354
      %v1367 = vpack.c.bf16 %v1357, %v1355
      %v1368 = vpack.c.bf16 %v1360, %v1358
      %v1369 = vpack.c.bf16 %v1361, %v1359
      %v1370 = vpack.c.bf16 %v1364, %v1362
      %v1371 = vpack.c.bf16 %v1365, %v1363
      %v1372 = vld [vmem:[%s7] sm:$0xff]
      %v1373 = vld [vmem:[%s7 + $0x8] sm:$0xff]
      %v1374 = vld [vmem:[%s7 + $0x10] sm:$0xff]
      %v1375 = vld [vmem:[%s7 + $0x18] sm:$0xff]
      %v1376 = vld [vmem:[%s7 + $0x20] sm:$0xff]
      %v1377 = vld [vmem:[%s7 + $0x28] sm:$0xff]
      %v1378 = vpack.c.bf16 %v857, %v854
      %v1379 = vpack.c.bf16 %v865, %v862
      %v1380 = vpack.c.bf16 %v873, %v870
      %v1381 = vpack.c.bf16 %v881, %v878
      %v1382 = vpack.c.bf16 %v889, %v886
      %v1383 = vpack.c.bf16 %v897, %v894
      %v1384 = vpack.c.bf16 %v905, %v902
      %v1385 = vpack.c.bf16 %v913, %v910
      %v1386 = vpack.c.bf16 %v921, %v918
      %v1387 = vpack.c.bf16 %v929, %v926
      %v1388 = vpack.c.bf16 %v937, %v934
      %v1389 = vpack.c.bf16 %v945, %v942
      %v1390 = vpack.c.bf16 %v953, %v950
      %v1391 = vpack.c.bf16 %v961, %v958
      %v1392 = vpack.c.bf16 %v969, %v966
      %v1393 = vpack.c.bf16 %v977, %v974
      %1394 = vmatprep.subr.bf16.mxu0 0
      %1395 = vmatpush1.bf16.msra.mxu0 %v1385
      %1396 = vmatprep.subr.bf16.mxu0 0
      %1397 = vmatpush1.bf16.msra.mxu0 %v1384
      %1398 = vmatprep.subr.bf16.mxu0 0
      %1399 = vmatpush1.bf16.msra.mxu0 %v1383
      %1400 = vmatprep.subr.bf16.mxu0 0
      %1401 = vmatpush1.bf16.msra.mxu0 %v1382
      %1402 = vmatprep.subr.bf16.mxu0 0
      %1403 = vmatpush1.bf16.msra.mxu0 %v1381
      %1404 = vmatprep.subr.bf16.mxu0 0
      %1405 = vmatpush1.bf16.msra.mxu0 %v1380
      %1406 = vmatprep.subr.bf16.mxu0 0
      %1407 = vmatpush1.bf16.msra.mxu0 %v1379
      %1408 = vmatprep.subr.bf16.mxu0 0
      %1409 = vmatpush1.bf16.msra.mxu0 %v1378
      %1410 = vmatprep.subr.bf16.mxu0 0
      %1411 = vmatpush2.bf16.msra.mxu0 %v1393
      %1412 = vmatprep.subr.bf16.mxu0 0
      %1413 = vmatpush2.bf16.msra.mxu0 %v1392
      %1414 = vmatprep.subr.bf16.mxu0 0
      %1415 = vmatpush2.bf16.msra.mxu0 %v1391
      %1416 = vmatprep.subr.bf16.mxu0 0
      %1417 = vmatpush2.bf16.msra.mxu0 %v1390
      %1418 = vmatprep.subr.bf16.mxu0 0
      %1419 = vmatpush2.bf16.msra.mxu0 %v1389
      %1420 = vmatprep.subr.bf16.mxu0 0
      %1421 = vmatpush2.bf16.msra.mxu0 %v1388
      %1422 = vmatprep.subr.bf16.mxu0 0
      %1423 = vmatpush2.bf16.msra.mxu0 %v1387
      %1424 = vmatprep.subr.bf16.mxu0 0
      %1425 = vmatpush2.bf16.msra.mxu0 %v1386
      %1426 = vmatprep.mubr.bf16.mxu0 %v1367
      %1427 = vmatmul.mubr.bf16.gmra.mxu0 %v1366
      %v1428 = vpop.f32.mrf.mxu0
      %v1429 = vadd.f32 0.0, %v1428
      %v1430 = vpop.f32.mrf.mxu0
      %v1431 = vpop.f32.mrf.mxu0
      %v1432 = vadd.f32 0.0, %v1431
      %v1433 = vpop.f32.mrf.mxu0
      %1434 = vmatprep.mubr.bf16.mxu0 %v1369
      %1435 = vmatmul.mubr.bf16.gmra.mxu0 %v1368
      %v1436 = vpop.f32.mrf.mxu0
      %v1437 = vadd.f32 0.0, %v1436
      %v1438 = vpop.f32.mrf.mxu0
      %v1439 = vpop.f32.mrf.mxu0
      %v1440 = vadd.f32 0.0, %v1439
      %v1441 = vpop.f32.mrf.mxu0
      %1442 = vmatprep.mubr.bf16.mxu0 %v1371
      %1443 = vmatmul.mubr.bf16.gmra.mxu0 %v1370
      %v1444 = vpop.f32.mrf.mxu0
      %v1445 = vadd.f32 0.0, %v1444
      %v1446 = vpop.f32.mrf.mxu0
      %v1447 = vpop.f32.mrf.mxu0
      %v1448 = vadd.f32 0.0, %v1447
      %v1449 = vpop.f32.mrf.mxu0
      %1450 = vdwg.mxu0
      %v1451 = vadd.f32 %v1372, %v1429
      %v1452 = vadd.f32 %v1373, %v1432
      %v1453 = vadd.f32 %v1374, %v1437
      %v1454 = vadd.f32 %v1375, %v1440
      %v1455 = vadd.f32 %v1376, %v1445
      %v1456 = vadd.f32 %v1377, %v1448
      %vm1457 = vcmask 64512
      %1458 = vst.msk [vmem:[%s7] sm:$0xff] %vm1457, %v1451
      %1459 = vst.msk [vmem:[%s7 + $0x8] sm:$0xff] %vm1457, %v1452
      %1460 = vst.msk [vmem:[%s7 + $0x10] sm:$0xff] %vm1457, %v1453
      %1461 = vst.msk [vmem:[%s7 + $0x18] sm:$0xff] %vm1457, %v1454
      %1462 = vst.msk [vmem:[%s7 + $0x20] sm:$0xff] %vm1457, %v1455
      %1463 = vst.msk [vmem:[%s7 + $0x28] sm:$0xff] %vm1457, %v1456
      %s1464 = smul.u32 32, %s20
      %p1465 = scmp.lt.s32.totalorder %s1464, 63
      %s1466 = scalar_select %p1465, %s1464, 63
      %s1467 = smul.addr %s1466, 8
      %s1468 = scalar_lea.vmem %s8, %s1467
      // Predicated region
      $region53: #{grevnet_forward.2} parent=47 // pred_check
        %p1469 = pneg %p195
      $region54: #{grevnet_forward.2} parent=47 // pred_check_branch
        %1471 = sbr.rel (%p1469) target = $region56
      $region55: #{grevnet_forward.2} parent=47 // pred_region
        _
      $region56: #{grevnet_forward.2} parent=47 // pred_fallthru
        _
      // Predicated region
      $region57: #{grevnet_forward.2} parent=47 // pred_check
        %p1472 = pneg %p221
      $region58: #{grevnet_forward.2} parent=47 // pred_check_branch
        %1474 = sbr.rel (%p1472) target = $region60
      $region59: #{grevnet_forward.2} parent=47 // pred_region
        %s1475 = smul.u32 32, %s20
      $region60: #{grevnet_forward.2} parent=47 // pred_fallthru
        _
      // Predicated region
      $region61: #{grevnet_forward.2} parent=47 // pred_check
        %p1476 = pneg %p195
      $region62: #{grevnet_forward.2} parent=47 // pred_check_branch
        %1478 = sbr.rel (%p1476) target = $region64
      $region63: #{grevnet_forward.2} parent=47 // pred_region
        _
      $region64: #{grevnet_forward.2} parent=47 // pred_fallthru
        _
    $region48: #{grevnet_forward.2} parent=5 // pred_fallthru
      _
    %p1479 = scmp.le.s32.totalorder 2, %s15
    // Predicated region
    $region65: #{grevnet_forward.2} parent=5 // pred_check
      %p1480 = pneg %p1479
    $region66: #{grevnet_forward.2} parent=5 // pred_check_branch
      %1482 = sbr.rel (%p1480) target = $region68
    $region67: #{grevnet_forward.2} parent=5 // pred_region
      %s1483 = ssub.s32 %s15, 2
      // Predicated region
      $region69: #{grevnet_forward.2} parent=67 // pred_check
        %p1484 = pneg %p227
      $region70: #{grevnet_forward.2} parent=67 // pred_check_branch
        %1486 = sbr.rel (%p1484) target = $region72
      $region71: #{grevnet_forward.2} parent=67 // pred_region
        %s1487 = smul.u32 32, %s21
        %p1488 = scmp.lt.s32.totalorder %s1487, 63
        %s1489 = scalar_select %p1488, %s1487, 63
        %s1490 = smul.addr %s1489, 8
        %s1491 = scalar_lea.vmem %s8, %s1490
      $region72: #{grevnet_forward.2} parent=67 // pred_fallthru
        _
    $region68: #{grevnet_forward.2} parent=5 // pred_fallthru
      _
  $region6: #{grevnet_forward.2} parent=0 // loop_footer
    %s19 = sadd.s32 1, %s15
  $region7: #{grevnet_forward.2} parent=0 // loop_footer_branch
    %14 = sbr.rel target = $region3
  $region8: #{grevnet_forward.2} parent=0 // loop_exit
    _

</llo_original>
